<compile_context>
chip_gen: v7x
topology: tpu7x:2x2x1
jax: 0.10.0
libtpu: 0.0.40
codegen_flags: <defaults>
</compile_context>

<pallas_src>
import functools
import math

import jax
import jax.numpy as jnp
from jax import lax
from jax.experimental import pallas as pl
from jax.experimental.pallas import tpu as pltpu

HID = 16          # traj_lstm_hidden_size / rela_embed_size
GATES = 4 * HID   # fused LSTM gate width (rows: i, f, o, g)

# ---------------------------------------------------------------------------
# Packed weight slab.  Every parameter is stored (out_features, in_features)
# so the kernel computes y = W @ x with x lane-dense (in, B).  Biases are
# stored (out, 1).  Row offsets are 8-aligned.
# ---------------------------------------------------------------------------
_PARAM_SHAPES = (
    ("we_emb",      (HID, 2)),      # hist-encoder input embedding  (stand-in)
    ("be_emb",      (HID, 1)),
    ("wenc_x",      (GATES, HID)),  # hist-encoder LSTM  W_ih (gate-reordered)
    ("wenc_h",      (GATES, HID)),  # hist-encoder LSTM  W_hh
    ("b_enc",       (GATES, 1)),
    ("wdec_ctx",    (HID, HID)),    # inputLayer_decoder cols for ctx
    ("wdec_out",    (HID, 2)),      # inputLayer_decoder cols for prev output
    ("bdec",        (HID, 1)),
    ("wdec_lstm_x", (GATES, HID)),  # pred_lstm_model W_ih
    ("wdec_lstm_h", (GATES, HID)),  # pred_lstm_model W_hh
    ("b_dec",       (GATES, 1)),
    ("wrel",        (HID, 2)),      # pooling rel-pos embedding     (stand-in)
    ("brel",        (HID, 1)),
    ("wcomb_pool",  (HID, HID)),    # pooling combine cols for pooled
    ("wcomb_hid",   (HID, HID)),    # pooling combine cols for hidden
    ("bcomb",       (HID, 1)),
    ("w1a",         (HID, HID)),    # pred_hidden2pos1 cols for hidden
    ("w1b",         (HID, 2)),      # pred_hidden2pos1 cols for rel_goal
    ("b1",          (HID, 1)),
    ("w2mu",        (2, HID)),      # pred_hidden2pos2 (mu rows)
    ("b2mu",        (2, 1)),
    ("w2sc",        (2, HID)),      # pred_hidden2pos2 (scale rows)
    ("b2sc",        (2, 1)),
)


def _build_layout():
    layout, off = {}, 0
    for name, (r, c) in _PARAM_SHAPES:
        layout[name] = (off, r, c)
        off += ((r + 7) // 8) * 8          # 8-row alignment per parameter
    return layout, off


_SLAB_LAYOUT, _SLAB_ROWS = _build_layout()
_SLAB_COLS = HID


def pack_params(params):
    slab = jnp.zeros((_SLAB_ROWS, _SLAB_COLS), jnp.float32)
    for name, (off, r, c) in _SLAB_LAYOUT.items():
        slab = slab.at[off:off + r, 0:c].set(params[name].astype(jnp.float32))
    return slab


def _traj_ar_goal_kernel(
    # ---- inputs (all lane-dense, B on the last axis) ----
    traj_rel_ref,   # (obs_len, 2, Bb)
    pos_last_ref,   # (2, Bb)
    rel_goal_ref,   # (2, Bb)
    nei_mask_ref,   # (num_h, Bb)
    z_ref,          # (pred_len, 2, Bb)   noise (zeros except robot rows)
    wslab_ref,      # (_SLAB_ROWS, _SLAB_COLS) packed weights
    # ---- outputs ----
    pred_ref,       # (pred_len, 2, Bb)
    nll_ref,        # (1, Bb)
    # ---- scratch ----
    emb_scratch,    # (obs_len, HID, Bb)
    *, obs_len, pred_len, num_h, lo, hi,
):
    Bb = pos_last_ref.shape[1]
    H = num_h

    def w(name):
        off, r, c = _SLAB_LAYOUT[name]
        return wslab_ref[off:off + r, 0:c]

    # ---- hoisted weight loads / bias broadcasts (loop invariant) ----
    we_emb = w("we_emb")
    be_emb = w("be_emb")
    wenc_x, wenc_h = w("wenc_x"), w("wenc_h")
    b_enc_b = jnp.broadcast_to(w("b_enc"), (GATES, Bb))
    wdec_ctx = w("wdec_ctx")
    wdo0 = w("wdec_out")[:, 0:1]
    wdo1 = w("wdec_out")[:, 1:2]
    bdec_b = jnp.broadcast_to(w("bdec"), (HID, Bb))
    wdx, wdh = w("wdec_lstm_x"), w("wdec_lstm_h")
    b_dec_b = jnp.broadcast_to(w("b_dec"), (GATES, Bb))
    wrel0 = w("wrel")[:, 0:1]
    wrel1 = w("wrel")[:, 1:2]
    brel_b = jnp.broadcast_to(w("brel"), (HID, Bb))
    wcomb_p, wcomb_h = w("wcomb_pool"), w("wcomb_hid")
    bcomb_b = jnp.broadcast_to(w("bcomb"), (HID, Bb))
    w1a = w("w1a")
    w1b = w("w1b")
    b1_b = jnp.broadcast_to(w("b1"), (HID, Bb))
    w2mu, w2sc = w("w2mu"), w("w2sc")
    b2mu_b = jnp.broadcast_to(w("b2mu"), (2, Bb))
    b2sc_b = jnp.broadcast_to(w("b2sc"), (2, Bb))

    def lstm_cell(x, h, c, wx, wh, b):
        # gates = Wx @ x + Wh @ h + b ; gate rows ordered (i, f, o, g)
        gates = (jnp.dot(wx, x, preferred_element_type=jnp.float32)
                 + jnp.dot(wh, h, preferred_element_type=jnp.float32) + b)
        ifo = jax.nn.sigmoid(gates[0:3 * HID, :])
        g = jnp.tanh(gates[3 * HID:4 * HID, :])
        c_new = ifo[HID:2 * HID, :] * c + ifo[0:HID, :] * g
        h_new = ifo[2 * HID:3 * HID, :] * jnp.tanh(c_new)
        return h_new, c_new

    # ---- history encoder (stand-in for Hist_Encoder) ----
    # batched input embedding for all obs_len steps in one op
    tr = traj_rel_ref[...]                                   # (obs_len, 2, Bb)
    emb_scratch[...] = jnp.maximum(
        tr[:, 0:1, :] * we_emb[:, 0:1][None]
        + tr[:, 1:2, :] * we_emb[:, 1:2][None]
        + be_emb[None], 0.0)                                 # (obs_len, HID, Bb)

    def enc_step(t, hc):
        h, c = hc
        return lstm_cell(emb_scratch[t], h, c, wenc_x, wenc_h, b_enc_b)

    zeros_h = jnp.zeros((HID, Bb), jnp.float32)
    h_enc, _ = lax.fori_loop(0, obs_len, enc_step, (zeros_h, zeros_h))

    # ---- decode-loop invariants ----
    output0 = traj_rel_ref[obs_len - 1]                      # (2, Bb)
    pos0 = pos_last_ref[...]                                 # (2, Bb)
    mask = nei_mask_ref[...]                                 # (H, Bb)
    rg = rel_goal_ref[...]
    # rel_goal contribution to pred_hidden2pos1 is constant: hoist it.
    goal_term = w1b[:, 0:1] * rg[0:1, :] + w1b[:, 1:2] * rg[1:2, :] + b1_b

    # per-agent-slot masks (agents of a sample are contiguous lanes)
    lane = lax.broadcasted_iota(jnp.int32, (1, Bb), 1)
    slot = lane % H
    slot_masks = [(slot == a).astype(jnp.float32) for a in range(H)]

    def dec_step(i, carry):
        pred_h, pred_c, ctx, output, pos, nll = carry

        # input_embedded = relu(inputLayer_decoder(cat([ctx, output])))
        emb = jnp.maximum(
            jnp.dot(wdec_ctx, ctx, preferred_element_type=jnp.float32)
            + wdo0 * output[0:1, :] + wdo1 * output[1:2, :] + bdec_b, 0.0)

        # pred_lstm_model
        pred_h, pred_c = lstm_cell(emb, pred_h, pred_c, wdx, wdh, b_dec_b)

        # ---- social pooling (stand-in for Pooling_net), O(B * num_h) ----
        # neighbour positions gathered with static lane rolls + slot masks:
        # nbr_j[n] = pos[group_start(n) + j]
        rolled = [pos if d == 0 else jnp.roll(pos, d, axis=1)
                  for d in range(-(H - 1), H)]
        pooled = jnp.zeros((HID, Bb), jnp.float32)
        for j in range(H):
            nbr = jnp.zeros((2, Bb), jnp.float32)
            for a in range(H):
                nbr = nbr + slot_masks[a] * rolled[(a - j) + (H - 1)]
            relx = pos[0:1, :] - nbr[0:1, :]
            rely = pos[1:2, :] - nbr[1:2, :]
            emb_rel = jnp.maximum(wrel0 * relx + wrel1 * rely + brel_b, 0.0)
            pooled = pooled + mask[j:j + 1, :] * emb_rel

        ctx = jnp.maximum(
            jnp.dot(wcomb_p, pooled, preferred_element_type=jnp.float32)
            + jnp.dot(wcomb_h, pred_h, preferred_element_type=jnp.float32)
            + bcomb_b, 0.0)

        concat_out = pred_h + ctx

        # h = relu(pred_hidden2pos1(cat([concat_out, rel_goal])))
        hh = jnp.maximum(
            jnp.dot(w1a, concat_out, preferred_element_type=jnp.float32)
            + goal_term, 0.0)

        # mu, scale = pred_hidden2pos2(h).chunk(2, 1)
        mu = jnp.dot(w2mu, hh, preferred_element_type=jnp.float32) + b2mu_b
        scale = jnp.clip(
            jnp.dot(w2sc, hh, preferred_element_type=jnp.float32) + b2sc_b,
            -9.0, 4.0)

        # mean_pred=True: noise is zero except robot rows, which carry z[i]
        out_pred = mu + jnp.exp(scale) * z_ref[i]
        # use_robot_model=False branch: clamp to speed limits (per coordinate)
        out_pred = jnp.clip(out_pred, lo, hi)

        nll = nll + jnp.sum((mu - out_pred) ** 2, axis=0, keepdims=True)
        pos = pos + out_pred

        pred_ref[i] = out_pred
        return (pred_h, pred_c, ctx, out_pred, pos, nll)

    carry = (h_enc, jnp.zeros((HID, Bb), jnp.float32),
             jnp.zeros((HID, Bb), jnp.float32), output0, pos0,
             jnp.zeros((1, Bb), jnp.float32))
    carry = lax.fori_loop(0, pred_len, dec_step, carry)
    nll_ref[...] = carry[5]


def _choose_block_b(B, H, target_b=1024):
    """Pick a lane block: whole samples per block, multiple of 128 when B allows."""
    step = (H * 128) // math.gcd(H, 128)          # lcm(num_h, 128)
    divisors = [d for d in range(step, B, step) if B % d == 0]
    if not divisors:
        return B
    at_least = [d for d in divisors if d >= target_b]
    return at_least[0] if at_least else divisors[-1]


def make_params(key):
    """Deterministic synthetic parameters in the fused/split layout above."""
    def w_(k, shape, scale=0.1):
        return (scale * jax.random.normal(k, shape)).astype(jnp.float32)
    keys = jax.random.split(key, len(_PARAM_SHAPES))
    return {name: w_(k, shape) for k, (name, shape) in zip(keys, _PARAM_SHAPES)}


def trajectory_generator_ar_goal(
    traj_rel, obs_traj_pos, nei_mask, sample_goal, z, robot_id, params,
    *, obs_len, pred_len, sample_batch, num_h, dt, min_speed, max_speed,
    block_samples=None, vmem_limit_bytes=32 * 1024 * 1024,
):
    B = obs_traj_pos.shape[1]
    assert B == sample_batch * num_h

    pos_last = obs_traj_pos[-1].astype(jnp.float32)                  # (B, 2)
    rel_goal = sample_goal.astype(jnp.float32) - pos_last            # (B, 2)

    # ---- lane-dense layouts: B on the last (lane) axis ----
    traj_rel_2B = jnp.transpose(traj_rel[:obs_len].astype(jnp.float32),
                                (0, 2, 1))                           # (T, 2, B)
    pos_last_2B = pos_last.T                                         # (2, B)
    rel_goal_2B = rel_goal.T                                         # (2, B)
    nei_mask_hb = nei_mask.astype(jnp.float32).T                     # (H, B)

    # sample_noise (mean_pred=True): zeros everywhere, z[i] at robot rows.
    # Kept as a tiny lane-dense (pred_len, 2, B) input (no lane padding).
    z_full = jnp.zeros((pred_len, B, 2), jnp.float32).at[:, robot_id].set(
        z.astype(jnp.float32))
    z_full_2B = jnp.transpose(z_full, (0, 2, 1))                     # (T, 2, B)

    wslab = pack_params(params)

    # ---- sample-group blocking (whole samples per block) ----
    if block_samples is None:
        block_b = _choose_block_b(B, num_h)
    else:
        block_b = block_samples * num_h
    assert B % block_b == 0 and block_b % num_h == 0
    num_blocks = B // block_b

    kernel = functools.partial(
        _traj_ar_goal_kernel,
        obs_len=obs_len, pred_len=pred_len, num_h=num_h,
        lo=float(min_speed * dt), hi=float(max_speed * dt),
    )

    in_specs = [
        pl.BlockSpec((obs_len, 2, block_b), lambda g: (0, 0, g)),    # traj_rel
        pl.BlockSpec((2, block_b), lambda g: (0, g)),                # pos_last
        pl.BlockSpec((2, block_b), lambda g: (0, g)),                # rel_goal
        pl.BlockSpec((num_h, block_b), lambda g: (0, g)),            # nei_mask
        pl.BlockSpec((pred_len, 2, block_b), lambda g: (0, 0, g)),   # z
        pl.BlockSpec((_SLAB_ROWS, _SLAB_COLS), lambda g: (0, 0)),    # weights
    ]
    out_specs = (
        pl.BlockSpec((pred_len, 2, block_b), lambda g: (0, 0, g)),   # pred
        pl.BlockSpec((1, block_b), lambda g: (0, g)),                # nll
    )

    inputs = (traj_rel_2B, pos_last_2B, rel_goal_2B, nei_mask_hb,
              z_full_2B, wslab)

    # Advisory cost estimate so XLA can schedule around this custom call.
    steps = obs_len + pred_len
    flops = int(2 * B * 2 * HID * GATES * steps
                + 2 * B * pred_len * (5 * HID * HID + 4 * HID)
                + 8 * B * num_h * (HID + num_h) * pred_len)
    transcendentals = int(B * (steps * 5 * HID + pred_len * 2))
    bytes_accessed = int(4 * (sum(x.size for x in inputs)
                              + pred_len * B * 2 + B))

    pred_2B, nll_2B = pl.pallas_call(
        kernel,
        out_shape=(
            jax.ShapeDtypeStruct((pred_len, 2, B), jnp.float32),
            jax.ShapeDtypeStruct((1, B), jnp.float32),
        ),
        grid_spec=pltpu.PrefetchScalarGridSpec(
            num_scalar_prefetch=0,
            grid=(num_blocks,),
            in_specs=in_specs,
            out_specs=out_specs,
            scratch_shapes=[pltpu.VMEM((obs_len, HID, block_b), jnp.float32)],
        ),
        compiler_params=pltpu.CompilerParams(
            dimension_semantics=("parallel",),
            vmem_limit_bytes=vmem_limit_bytes),
        cost_estimate=pl.CostEstimate(
            flops=flops, transcendentals=transcendentals,
            bytes_accessed=bytes_accessed),
    )(*inputs)

    pred_traj_rel = jnp.transpose(pred_2B, (0, 2, 1))                # (T, B, 2)
    nll_robot = nll_2B[0][robot_id]                                  # nll[robotID]
    # TODO(synk): clamped_action comes from the dynamic_window robot-model
    #             branch (use_robot_model=True), which is not defined here.
    return pred_traj_rel, nll_robot


# ---------------------------------------------------------------------------
# Pure-JAX reference (batch-major), mirroring the kernel math exactly.
# ---------------------------------------------------------------------------
def _reference_forward(params, traj_rel, obs_traj_pos, nei_mask, sample_goal,
                       z_full, *, obs_len, pred_len, sample_batch, num_h,
                       lo, hi):
    B = obs_traj_pos.shape[1]

    def lin(x, wname, bname):
        return x @ params[wname].T + params[bname].reshape(1, -1)

    def lstm(x, h, c, wx, wh, b):
        g = x @ params[wx].T + h @ params[wh].T + params[b].reshape(1, -1)
        i = jax.nn.sigmoid(g[:, 0:HID])
        f = jax.nn.sigmoid(g[:, HID:2 * HID])
        o = jax.nn.sigmoid(g[:, 2 * HID:3 * HID])
        gg = jnp.tanh(g[:, 3 * HID:4 * HID])
        c = f * c + i * gg
        return o * jnp.tanh(c), c

    h = jnp.zeros((B, HID), jnp.float32)
    c = jnp.zeros((B, HID), jnp.float32)
    for t in range(obs_len):
        e = jax.nn.relu(lin(traj_rel[t], "we_emb", "be_emb"))
        h, c = lstm(e, h, c, "wenc_x", "wenc_h", "b_enc")

    pred_h, pred_c = h, jnp.zeros_like(h)
    output = traj_rel[obs_len - 1]
    pos = obs_traj_pos[-1]
    rel_goal = sample_goal - pos
    ctx = jnp.zeros((B, HID), jnp.float32)
    nll = jnp.zeros((B,), jnp.float32)
    preds = []
    for i in range(pred_len):
        emb = jax.nn.relu(ctx @ params["wdec_ctx"].T
                          + output @ params["wdec_out"].T
                          + params["bdec"].reshape(1, -1))
        pred_h, pred_c = lstm(emb, pred_h, pred_c,
                              "wdec_lstm_x", "wdec_lstm_h", "b_dec")
        pos_g = pos.reshape(sample_batch, num_h, 2)
        rel = (pos_g[:, :, None, :] - pos_g[:, None, :, :]).reshape(B, num_h, 2)
        emb_rel = jax.nn.relu(rel @ params["wrel"].T
                              + params["brel"].reshape(1, 1, -1))
        pooled = jnp.sum(emb_rel * nei_mask[:, :, None], axis=1)
        ctx = jax.nn.relu(pooled @ params["wcomb_pool"].T
                          + pred_h @ params["wcomb_hid"].T
                          + params["bcomb"].reshape(1, -1))
        concat_out = pred_h + ctx
        hh = jax.nn.relu(concat_out @ params["w1a"].T
                         + rel_goal @ params["w1b"].T
                         + params["b1"].reshape(1, -1))
        mu = hh @ params["w2mu"].T + params["b2mu"].reshape(1, -1)
        sc = jnp.clip(hh @ params["w2sc"].T + params["b2sc"].reshape(1, -1),
                      -9.0, 4.0)
        out_pred = jnp.clip(mu + jnp.exp(sc) * z_full[i], lo, hi)
        nll = nll + jnp.sum((mu - out_pred) ** 2, axis=-1)
        pos = pos + out_pred
        preds.append(out_pred)
        output = out_pred
    return jnp.stack(preds), nll


if __name__ == "__main__":
    key = jax.random.PRNGKey(0)
    k_par, k_tr, k_pos, k_goal, k_z = jax.random.split(key, 5)

    obs_len = 8
    pred_len = 12
    sample_batch = 8
    num_h = 2
    B = sample_batch * num_h
    dt = 0.4
    min_speed, max_speed = -0.5, 1.0
    lo, hi = min_speed * dt, max_speed * dt

    params = make_params(k_par)

    traj_rel = 0.1 * jax.random.normal(k_tr, (obs_len, B, 2), jnp.float32)
    obs_traj_pos = jax.random.normal(k_pos, (obs_len, B, 2), jnp.float32)
    sample_goal = jax.random.normal(k_goal, (B, 2), jnp.float32)

    # neighbour mask: attend to all agents of the same sample except self
    agent_idx = jnp.arange(B) % num_h
    nei_mask = (agent_idx[:, None] != jnp.arange(num_h)[None, :]).astype(
        jnp.float32)

    # robot = agent 0 of each sample
    robot_id = jnp.arange(sample_batch) * num_h
    z = 0.1 * jax.random.normal(k_z, (pred_len, sample_batch, 2), jnp.float32)

    pred_traj_rel, nll_robot = trajectory_generator_ar_goal(
        traj_rel, obs_traj_pos, nei_mask, sample_goal, z, robot_id, params,
        obs_len=obs_len, pred_len=pred_len, sample_batch=sample_batch,
        num_h=num_h, dt=dt, min_speed=min_speed, max_speed=max_speed,
    )
    jax.block_until_ready((pred_traj_rel, nll_robot))

    assert pred_traj_rel.shape == (pred_len, B, 2)
    assert nll_robot.shape == (sample_batch,)
    assert bool(jnp.all(jnp.isfinite(pred_traj_rel)))
    assert bool(jnp.all(jnp.isfinite(nll_robot)))

    # pure-JAX reference check
    z_full = jnp.zeros((pred_len, B, 2), jnp.float32).at[:, robot_id].set(z)
    pred_ref, nll_ref = _reference_forward(
        params, traj_rel, obs_traj_pos, nei_mask, sample_goal, z_full,
        obs_len=obs_len, pred_len=pred_len, sample_batch=sample_batch,
        num_h=num_h, lo=lo, hi=hi)
    nll_robot_ref = nll_ref[robot_id]

    err_pred = float(jnp.max(jnp.abs(pred_traj_rel - pred_ref)))
    err_nll = float(jnp.max(jnp.abs(nll_robot - nll_robot_ref)))
    assert err_pred < 5e-3, f"pred mismatch vs reference: {err_pred}"
    assert err_nll < 5e-2, f"nll mismatch vs reference: {err_nll}"

    print("KERNEL_OK")
</pallas_src>

<mosaic_0001>
module attributes {stable_mosaic.version = 11 : i64} {
  func.func @_traj_ar_goal_kernel(%arg0: i32, %arg1: memref<8x2x16xf32, #tpu.memory_space<vmem>>, %arg2: memref<2x16xf32, #tpu.memory_space<vmem>>, %arg3: memref<2x16xf32, #tpu.memory_space<vmem>>, %arg4: memref<2x16xf32, #tpu.memory_space<vmem>>, %arg5: memref<12x2x16xf32, #tpu.memory_space<vmem>>, %arg6: memref<624x16xf32, #tpu.memory_space<vmem>>, %arg7: memref<12x2x16xf32, #tpu.memory_space<vmem>>, %arg8: memref<1x16xf32, #tpu.memory_space<vmem>>, %arg9: memref<8x16x16xf32, #tpu.memory_space<vmem>>) attributes {dimension_semantics = [#tpu.dimension_semantics<parallel>], iteration_bounds = array<i64: 1>, scalar_prefetch = 0 : i64, scratch_operands = 1 : i64, tpu.core_type = #tpu.core_type<tc>, window_params = [{transform_indices = @transform_0, window_bounds = array<i64: 8, 2, 16>}, {transform_indices = @transform_1, window_bounds = array<i64: 2, 16>}, {transform_indices = @transform_2, window_bounds = array<i64: 2, 16>}, {transform_indices = @transform_3, window_bounds = array<i64: 2, 16>}, {transform_indices = @transform_4, window_bounds = array<i64: 12, 2, 16>}, {pipeline_mode = #tpu.pipeline_mode<synchronous>, transform_indices = @transform_5, window_bounds = array<i64: 624, 16>}, {transform_indices = @transform_6, window_bounds = array<i64: 12, 2, 16>}, {transform_indices = @transform_7, window_bounds = array<i64: 1, 16>}]} {
    %c0 = arith.constant 0 : index
    %c0_0 = arith.constant 0 : index
    %0 = vector.load %arg6[%c0, %c0_0] : memref<624x16xf32, #tpu.memory_space<vmem>>, vector<16x2xf32>
    %c16 = arith.constant 16 : index
    %c0_1 = arith.constant 0 : index
    %1 = vector.load %arg6[%c16, %c0_1] : memref<624x16xf32, #tpu.memory_space<vmem>>, vector<16x1xf32>
    %c32 = arith.constant 32 : index
    %c0_2 = arith.constant 0 : index
    %2 = vector.load %arg6[%c32, %c0_2] : memref<624x16xf32, #tpu.memory_space<vmem>>, vector<64x16xf32>
    %c96 = arith.constant 96 : index
    %c0_3 = arith.constant 0 : index
    %3 = vector.load %arg6[%c96, %c0_3] : memref<624x16xf32, #tpu.memory_space<vmem>>, vector<64x16xf32>
    %c160 = arith.constant 160 : index
    %c0_4 = arith.constant 0 : index
    %4 = vector.load %arg6[%c160, %c0_4] : memref<624x16xf32, #tpu.memory_space<vmem>>, vector<64x1xf32>
    %5 = vector.shape_cast %4 : vector<64x1xf32> to vector<64x1xf32>
    %6 = vector.broadcast %5 : vector<64x1xf32> to vector<64x16xf32>
    %c224 = arith.constant 224 : index
    %c0_5 = arith.constant 0 : index
    %7 = vector.load %arg6[%c224, %c0_5] : memref<624x16xf32, #tpu.memory_space<vmem>>, vector<16x16xf32>
    %c240 = arith.constant 240 : index
    %c0_6 = arith.constant 0 : index
    %8 = vector.load %arg6[%c240, %c0_6] : memref<624x16xf32, #tpu.memory_space<vmem>>, vector<16x2xf32>
    %9 = vector.extract_strided_slice %8 {offsets = [0, 0], sizes = [16, 1], strides = [1, 1]} : vector<16x2xf32> to vector<16x1xf32>
    %c240_7 = arith.constant 240 : index
    %c0_8 = arith.constant 0 : index
    %10 = vector.load %arg6[%c240_7, %c0_8] : memref<624x16xf32, #tpu.memory_space<vmem>>, vector<16x2xf32>
    %11 = vector.extract_strided_slice %10 {offsets = [0, 1], sizes = [16, 1], strides = [1, 1]} : vector<16x2xf32> to vector<16x1xf32>
    %c256 = arith.constant 256 : index
    %c0_9 = arith.constant 0 : index
    %12 = vector.load %arg6[%c256, %c0_9] : memref<624x16xf32, #tpu.memory_space<vmem>>, vector<16x1xf32>
    %13 = vector.shape_cast %12 : vector<16x1xf32> to vector<16x1xf32>
    %14 = vector.broadcast %13 : vector<16x1xf32> to vector<16x16xf32>
    %c272 = arith.constant 272 : index
    %c0_10 = arith.constant 0 : index
    %15 = vector.load %arg6[%c272, %c0_10] : memref<624x16xf32, #tpu.memory_space<vmem>>, vector<64x16xf32>
    %c336 = arith.constant 336 : index
    %c0_11 = arith.constant 0 : index
    %16 = vector.load %arg6[%c336, %c0_11] : memref<624x16xf32, #tpu.memory_space<vmem>>, vector<64x16xf32>
    %c400 = arith.constant 400 : index
    %c0_12 = arith.constant 0 : index
    %17 = vector.load %arg6[%c400, %c0_12] : memref<624x16xf32, #tpu.memory_space<vmem>>, vector<64x1xf32>
    %18 = vector.shape_cast %17 : vector<64x1xf32> to vector<64x1xf32>
    %19 = vector.broadcast %18 : vector<64x1xf32> to vector<64x16xf32>
    %c464 = arith.constant 464 : index
    %c0_13 = arith.constant 0 : index
    %20 = vector.load %arg6[%c464, %c0_13] : memref<624x16xf32, #tpu.memory_space<vmem>>, vector<16x2xf32>
    %21 = vector.extract_strided_slice %20 {offsets = [0, 0], sizes = [16, 1], strides = [1, 1]} : vector<16x2xf32> to vector<16x1xf32>
    %c464_14 = arith.constant 464 : index
    %c0_15 = arith.constant 0 : index
    %22 = vector.load %arg6[%c464_14, %c0_15] : memref<624x16xf32, #tpu.memory_space<vmem>>, vector<16x2xf32>
    %23 = vector.extract_strided_slice %22 {offsets = [0, 1], sizes = [16, 1], strides = [1, 1]} : vector<16x2xf32> to vector<16x1xf32>
    %c480 = arith.constant 480 : index
    %c0_16 = arith.constant 0 : index
    %24 = vector.load %arg6[%c480, %c0_16] : memref<624x16xf32, #tpu.memory_space<vmem>>, vector<16x1xf32>
    %25 = vector.shape_cast %24 : vector<16x1xf32> to vector<16x1xf32>
    %26 = vector.broadcast %25 : vector<16x1xf32> to vector<16x16xf32>
    %c496 = arith.constant 496 : index
    %c0_17 = arith.constant 0 : index
    %27 = vector.load %arg6[%c496, %c0_17] : memref<624x16xf32, #tpu.memory_space<vmem>>, vector<16x16xf32>
    %c512 = arith.constant 512 : index
    %c0_18 = arith.constant 0 : index
    %28 = vector.load %arg6[%c512, %c0_18] : memref<624x16xf32, #tpu.memory_space<vmem>>, vector<16x16xf32>
    %c528 = arith.constant 528 : index
    %c0_19 = arith.constant 0 : index
    %29 = vector.load %arg6[%c528, %c0_19] : memref<624x16xf32, #tpu.memory_space<vmem>>, vector<16x1xf32>
    %30 = vector.shape_cast %29 : vector<16x1xf32> to vector<16x1xf32>
    %31 = vector.broadcast %30 : vector<16x1xf32> to vector<16x16xf32>
    %c544 = arith.constant 544 : index
    %c0_20 = arith.constant 0 : index
    %32 = vector.load %arg6[%c544, %c0_20] : memref<624x16xf32, #tpu.memory_space<vmem>>, vector<16x16xf32>
    %c560 = arith.constant 560 : index
    %c0_21 = arith.constant 0 : index
    %33 = vector.load %arg6[%c560, %c0_21] : memref<624x16xf32, #tpu.memory_space<vmem>>, vector<16x2xf32>
    %c576 = arith.constant 576 : index
    %c0_22 = arith.constant 0 : index
    %34 = vector.load %arg6[%c576, %c0_22] : memref<624x16xf32, #tpu.memory_space<vmem>>, vector<16x1xf32>
    %35 = vector.shape_cast %34 : vector<16x1xf32> to vector<16x1xf32>
    %36 = vector.broadcast %35 : vector<16x1xf32> to vector<16x16xf32>
    %c592 = arith.constant 592 : index
    %c0_23 = arith.constant 0 : index
    %37 = vector.load %arg6[%c592, %c0_23] : memref<624x16xf32, #tpu.memory_space<vmem>>, vector<2x16xf32>
    %c608 = arith.constant 608 : index
    %c0_24 = arith.constant 0 : index
    %38 = vector.load %arg6[%c608, %c0_24] : memref<624x16xf32, #tpu.memory_space<vmem>>, vector<2x16xf32>
    %c600 = arith.constant 600 : index
    %c0_25 = arith.constant 0 : index
    %39 = vector.load %arg6[%c600, %c0_25] : memref<624x16xf32, #tpu.memory_space<vmem>>, vector<2x1xf32>
    %40 = vector.shape_cast %39 : vector<2x1xf32> to vector<2x1xf32>
    %41 = vector.broadcast %40 : vector<2x1xf32> to vector<2x16xf32>
    %c616 = arith.constant 616 : index
    %c0_26 = arith.constant 0 : index
    %42 = vector.load %arg6[%c616, %c0_26] : memref<624x16xf32, #tpu.memory_space<vmem>>, vector<2x1xf32>
    %43 = vector.shape_cast %42 : vector<2x1xf32> to vector<2x1xf32>
    %44 = vector.broadcast %43 : vector<2x1xf32> to vector<2x16xf32>
    %c0_27 = arith.constant 0 : index
    %c0_28 = arith.constant 0 : index
    %c0_29 = arith.constant 0 : index
    %45 = vector.load %arg1[%c0_27, %c0_28, %c0_29] : memref<8x2x16xf32, #tpu.memory_space<vmem>>, vector<8x2x16xf32>
    %46 = vector.extract_strided_slice %45 {offsets = [0, 0, 0], sizes = [8, 1, 16], strides = [1, 1, 1]} : vector<8x2x16xf32> to vector<8x1x16xf32>
    %47 = vector.extract_strided_slice %0 {offsets = [0, 0], sizes = [16, 1], strides = [1, 1]} : vector<16x2xf32> to vector<16x1xf32>
    %48 = vector.shape_cast %47 : vector<16x1xf32> to vector<1x16x1xf32>
    %49 = vector.broadcast %46 : vector<8x1x16xf32> to vector<8x16x16xf32>
    %50 = vector.broadcast %48 : vector<1x16x1xf32> to vector<8x16x16xf32>
    %51 = arith.mulf %49, %50 : vector<8x16x16xf32>
    %52 = vector.extract_strided_slice %45 {offsets = [0, 1, 0], sizes = [8, 1, 16], strides = [1, 1, 1]} : vector<8x2x16xf32> to vector<8x1x16xf32>
    %53 = vector.extract_strided_slice %0 {offsets = [0, 1], sizes = [16, 1], strides = [1, 1]} : vector<16x2xf32> to vector<16x1xf32>
    %54 = vector.shape_cast %53 : vector<16x1xf32> to vector<1x16x1xf32>
    %55 = vector.broadcast %52 : vector<8x1x16xf32> to vector<8x16x16xf32>
    %56 = vector.broadcast %54 : vector<1x16x1xf32> to vector<8x16x16xf32>
    %57 = arith.mulf %55, %56 : vector<8x16x16xf32>
    %58 = arith.addf %51, %57 : vector<8x16x16xf32>
    %59 = vector.shape_cast %1 : vector<16x1xf32> to vector<1x16x1xf32>
    %60 = vector.broadcast %59 : vector<1x16x1xf32> to vector<8x16x16xf32>
    %61 = arith.addf %58, %60 : vector<8x16x16xf32>
    %cst = arith.constant 0.000000e+00 : f32
    %62 = vector.broadcast %cst : f32 to vector<8x16x16xf32>
    %63 = arith.maximumf %61, %62 : vector<8x16x16xf32>
    %c0_30 = arith.constant 0 : index
    %c0_31 = arith.constant 0 : index
    %c0_32 = arith.constant 0 : index
    %64 = vector.load %arg9[%c0_30, %c0_31, %c0_32] : memref<8x16x16xf32, #tpu.memory_space<vmem>>, vector<8x16x16xf32>
    tpu.vector_store %arg9[%c0_30, %c0_31, %c0_32], %63 {strides = array<i32>} : memref<8x16x16xf32, #tpu.memory_space<vmem>>, vector<8x16x16xf32>,
    %cst_33 = arith.constant 0.000000e+00 : f32
    %65 = vector.broadcast %cst_33 : f32 to vector<16x16xf32>
    %c0_i32 = arith.constant 0 : i32
    %c8_i32 = arith.constant 8 : i32
    %66 = arith.addi %c0_i32, %c8_i32 : i32
    %c1_i32 = arith.constant 1 : i32
    %67:2 = scf.for %arg10 = %c0_i32 to %66 step %c1_i32 iter_args(%arg11 = %65, %arg12 = %65) -> (vector<16x16xf32>, vector<16x16xf32>)  : i32 {
      %116 = arith.index_cast %arg10 : i32 to index
      %c0_58 = arith.constant 0 : index
      %c0_59 = arith.constant 0 : index
      %117 = vector.load %arg9[%116, %c0_58, %c0_59] : memref<8x16x16xf32, #tpu.memory_space<vmem>>, vector<1x16x16xf32>
      %118 = vector.shape_cast %117 : vector<1x16x16xf32> to vector<16x16xf32>
      %cst_60 = arith.constant dense<0.000000e+00> : vector<64x16xf32>
      %119 = tpu.matmul %2, %118, %cst_60 {dimension_numbers = #tpu.dot_dimension_numbers<[1], [0], [0], [1], [0, 0, 1, 1], [], []>} : vector<64x16xf32>, vector<16x16xf32>, vector<64x16xf32> -> vector<64x16xf32>
      %cst_61 = arith.constant dense<0.000000e+00> : vector<64x16xf32>
      %120 = tpu.matmul %3, %arg11, %cst_61 {dimension_numbers = #tpu.dot_dimension_numbers<[1], [0], [0], [1], [0, 0, 1, 1], [], []>} : vector<64x16xf32>, vector<16x16xf32>, vector<64x16xf32> -> vector<64x16xf32>
      %121 = arith.addf %119, %120 : vector<64x16xf32>
      %122 = arith.addf %121, %6 : vector<64x16xf32>
      %123 = vector.extract_strided_slice %122 {offsets = [0, 0], sizes = [48, 16], strides = [1, 1]} : vector<64x16xf32> to vector<48x16xf32>
      %124 = arith.negf %123 : vector<48x16xf32>
      %125 = math.exp %124 : vector<48x16xf32>
      %cst_62 = arith.constant 1.000000e+00 : f32
      %126 = vector.broadcast %cst_62 : f32 to vector<48x16xf32>
      %127 = arith.addf %126, %125 : vector<48x16xf32>
      %128 = arith.divf %126, %127 : vector<48x16xf32>
      %129 = vector.extract_strided_slice %122 {offsets = [48, 0], sizes = [16, 16], strides = [1, 1]} : vector<64x16xf32> to vector<16x16xf32>
      %130 = math.tanh %129 : vector<16x16xf32>
      %131 = vector.extract_strided_slice %128 {offsets = [16, 0], sizes = [16, 16], strides = [1, 1]} : vector<48x16xf32> to vector<16x16xf32>
      %132 = arith.mulf %131, %arg12 : vector<16x16xf32>
      %133 = vector.extract_strided_slice %128 {offsets = [0, 0], sizes = [16, 16], strides = [1, 1]} : vector<48x16xf32> to vector<16x16xf32>
      %134 = arith.mulf %133, %130 : vector<16x16xf32>
      %135 = arith.addf %132, %134 : vector<16x16xf32>
      %136 = vector.extract_strided_slice %128 {offsets = [32, 0], sizes = [16, 16], strides = [1, 1]} : vector<48x16xf32> to vector<16x16xf32>
      %137 = math.tanh %135 : vector<16x16xf32>
      %138 = arith.mulf %136, %137 : vector<16x16xf32>
      scf.yield %138, %135 : vector<16x16xf32>, vector<16x16xf32>
    }
    %c8_i32_34 = arith.constant 8 : i32
    %c7 = arith.constant 7 : index
    %c0_35 = arith.constant 0 : index
    %c0_36 = arith.constant 0 : index
    %68 = vector.load %arg1[%c7, %c0_35, %c0_36] : memref<8x2x16xf32, #tpu.memory_space<vmem>>, vector<1x2x16xf32>
    %69 = vector.shape_cast %68 : vector<1x2x16xf32> to vector<2x16xf32>
    %c0_37 = arith.constant 0 : index
    %c0_38 = arith.constant 0 : index
    %70 = vector.load %arg2[%c0_37, %c0_38] : memref<2x16xf32, #tpu.memory_space<vmem>>, vector<2x16xf32>
    %c0_39 = arith.constant 0 : index
    %c0_40 = arith.constant 0 : index
    %71 = vector.load %arg4[%c0_39, %c0_40] : memref<2x16xf32, #tpu.memory_space<vmem>>, vector<2x16xf32>
    %c0_41 = arith.constant 0 : index
    %c0_42 = arith.constant 0 : index
    %72 = vector.load %arg3[%c0_41, %c0_42] : memref<2x16xf32, #tpu.memory_space<vmem>>, vector<2x16xf32>
    %73 = vector.extract_strided_slice %33 {offsets = [0, 0], sizes = [16, 1], strides = [1, 1]} : vector<16x2xf32> to vector<16x1xf32>
    %74 = vector.extract_strided_slice %72 {offsets = [0, 0], sizes = [1, 16], strides = [1, 1]} : vector<2x16xf32> to vector<1x16xf32>
    %75 = vector.broadcast %73 : vector<16x1xf32> to vector<16x16xf32>
    %76 = vector.broadcast %74 : vector<1x16xf32> to vector<16x16xf32>
    %77 = arith.mulf %75, %76 : vector<16x16xf32>
    %78 = vector.extract_strided_slice %33 {offsets = [0, 1], sizes = [16, 1], strides = [1, 1]} : vector<16x2xf32> to vector<16x1xf32>
    %79 = vector.extract_strided_slice %72 {offsets = [1, 0], sizes = [1, 16], strides = [1, 1]} : vector<2x16xf32> to vector<1x16xf32>
    %80 = vector.broadcast %78 : vector<16x1xf32> to vector<16x16xf32>
    %81 = vector.broadcast %79 : vector<1x16xf32> to vector<16x16xf32>
    %82 = arith.mulf %80, %81 : vector<16x16xf32>
    %83 = arith.addf %77, %82 : vector<16x16xf32>
    %84 = arith.addf %83, %36 : vector<16x16xf32>
    %85 = tpu.iota {dimensions = array<i32: 1>} : vector<1x16xi32>
    %c2_i32 = arith.constant 2 : i32
    %c0_i32_43 = arith.constant 0 : i32
    %86 = arith.cmpi eq, %c2_i32, %c0_i32_43 : i32
    %c1_i32_44 = arith.constant 1 : i32
    %87 = arith.select %86, %c1_i32_44, %c2_i32 : i32
    %88 = vector.broadcast %87 : i32 to vector<1x16xi32>
    %89 = arith.remsi %85, %88 : vector<1x16xi32>
    %c0_i32_45 = arith.constant 0 : i32
    %90 = vector.broadcast %c0_i32_45 : i32 to vector<1x16xi32>
    %91 = arith.cmpi ne, %89, %90 : vector<1x16xi32>
    %c0_i32_46 = arith.constant 0 : i32
    %92 = vector.broadcast %c0_i32_46 : i32 to vector<1x16xi32>
    %93 = arith.cmpi slt, %89, %92 : vector<1x16xi32>
    %c0_i32_47 = arith.constant 0 : i32
    %94 = arith.cmpi slt, %87, %c0_i32_47 : i32
    %95 = vector.broadcast %94 : i1 to vector<1x16xi1>
    %96 = vector.broadcast %95 : vector<1x16xi1> to vector<1x16xi1>
    %97 = arith.xori %93, %96 : vector<1x16xi1>
    %98 = arith.andi %97, %91 : vector<1x16xi1>
    %99 = vector.broadcast %87 : i32 to vector<1x16xi32>
    %100 = arith.addi %89, %99 : vector<1x16xi32>
    %101 = arith.select %98, %100, %89 : vector<1x16xi1>, vector<1x16xi32>
    %c0_i32_48 = arith.constant 0 : i32
    %102 = vector.broadcast %c0_i32_48 : i32 to vector<1x16xi32>
    %103 = arith.cmpi eq, %101, %102 : vector<1x16xi32>
    %104 = arith.extui %103 : vector<1x16xi1> to vector<1x16xi32>
    %105 = arith.sitofp %104 : vector<1x16xi32> to vector<1x16xf32>
    %c1_i32_49 = arith.constant 1 : i32
    %106 = vector.broadcast %c1_i32_49 : i32 to vector<1x16xi32>
    %107 = arith.cmpi eq, %101, %106 : vector<1x16xi32>
    %108 = arith.extui %107 : vector<1x16xi1> to vector<1x16xi32>
    %109 = arith.sitofp %108 : vector<1x16xi32> to vector<1x16xf32>
    %cst_50 = arith.constant 0.000000e+00 : f32
    %110 = vector.broadcast %cst_50 : f32 to vector<16x16xf32>
    %cst_51 = arith.constant 0.000000e+00 : f32
    %111 = vector.broadcast %cst_51 : f32 to vector<16x16xf32>
    %cst_52 = arith.constant 0.000000e+00 : f32
    %112 = vector.broadcast %cst_52 : f32 to vector<1x16xf32>
    %c0_i32_53 = arith.constant 0 : i32
    %c12_i32 = arith.constant 12 : i32
    %113 = arith.addi %c0_i32_53, %c12_i32 : i32
    %c1_i32_54 = arith.constant 1 : i32
    %114:6 = scf.for %arg10 = %c0_i32_53 to %113 step %c1_i32_54 iter_args(%arg11 = %67#0, %arg12 = %110, %arg13 = %111, %arg14 = %69, %arg15 = %70, %arg16 = %112) -> (vector<16x16xf32>, vector<16x16xf32>, vector<16x16xf32>, vector<2x16xf32>, vector<2x16xf32>, vector<1x16xf32>)  : i32 {
      %cst_58 = arith.constant dense<0.000000e+00> : vector<16x16xf32>
      %116 = tpu.matmul %7, %arg13, %cst_58 {dimension_numbers = #tpu.dot_dimension_numbers<[1], [0], [0], [1], [0, 0, 1, 1], [], []>} : vector<16x16xf32>, vector<16x16xf32>, vector<16x16xf32> -> vector<16x16xf32>
      %117 = vector.extract_strided_slice %arg14 {offsets = [0, 0], sizes = [1, 16], strides = [1, 1]} : vector<2x16xf32> to vector<1x16xf32>
      %118 = vector.broadcast %9 : vector<16x1xf32> to vector<16x16xf32>
      %119 = vector.broadcast %117 : vector<1x16xf32> to vector<16x16xf32>
      %120 = arith.mulf %118, %119 : vector<16x16xf32>
      %121 = arith.addf %116, %120 : vector<16x16xf32>
      %122 = vector.extract_strided_slice %arg14 {offsets = [1, 0], sizes = [1, 16], strides = [1, 1]} : vector<2x16xf32> to vector<1x16xf32>
      %123 = vector.broadcast %11 : vector<16x1xf32> to vector<16x16xf32>
      %124 = vector.broadcast %122 : vector<1x16xf32> to vector<16x16xf32>
      %125 = arith.mulf %123, %124 : vector<16x16xf32>
      %126 = arith.addf %121, %125 : vector<16x16xf32>
      %127 = arith.addf %126, %14 : vector<16x16xf32>
      %cst_59 = arith.constant 0.000000e+00 : f32
      %128 = vector.broadcast %cst_59 : f32 to vector<16x16xf32>
      %129 = arith.maximumf %127, %128 : vector<16x16xf32>
      %cst_60 = arith.constant dense<0.000000e+00> : vector<64x16xf32>
      %130 = tpu.matmul %15, %129, %cst_60 {dimension_numbers = #tpu.dot_dimension_numbers<[1], [0], [0], [1], [0, 0, 1, 1], [], []>} : vector<64x16xf32>, vector<16x16xf32>, vector<64x16xf32> -> vector<64x16xf32>
      %cst_61 = arith.constant dense<0.000000e+00> : vector<64x16xf32>
      %131 = tpu.matmul %16, %arg11, %cst_61 {dimension_numbers = #tpu.dot_dimension_numbers<[1], [0], [0], [1], [0, 0, 1, 1], [], []>} : vector<64x16xf32>, vector<16x16xf32>, vector<64x16xf32> -> vector<64x16xf32>
      %132 = arith.addf %130, %131 : vector<64x16xf32>
      %133 = arith.addf %132, %19 : vector<64x16xf32>
      %134 = vector.extract_strided_slice %133 {offsets = [0, 0], sizes = [48, 16], strides = [1, 1]} : vector<64x16xf32> to vector<48x16xf32>
      %135 = arith.negf %134 : vector<48x16xf32>
      %136 = math.exp %135 : vector<48x16xf32>
      %cst_62 = arith.constant 1.000000e+00 : f32
      %137 = vector.broadcast %cst_62 : f32 to vector<48x16xf32>
      %138 = arith.addf %137, %136 : vector<48x16xf32>
      %139 = arith.divf %137, %138 : vector<48x16xf32>
      %140 = vector.extract_strided_slice %133 {offsets = [48, 0], sizes = [16, 16], strides = [1, 1]} : vector<64x16xf32> to vector<16x16xf32>
      %141 = math.tanh %140 : vector<16x16xf32>
      %142 = vector.extract_strided_slice %139 {offsets = [16, 0], sizes = [16, 16], strides = [1, 1]} : vector<48x16xf32> to vector<16x16xf32>
      %143 = arith.mulf %142, %arg12 : vector<16x16xf32>
      %144 = vector.extract_strided_slice %139 {offsets = [0, 0], sizes = [16, 16], strides = [1, 1]} : vector<48x16xf32> to vector<16x16xf32>
      %145 = arith.mulf %144, %141 : vector<16x16xf32>
      %146 = arith.addf %143, %145 : vector<16x16xf32>
      %147 = vector.extract_strided_slice %139 {offsets = [32, 0], sizes = [16, 16], strides = [1, 1]} : vector<48x16xf32> to vector<16x16xf32>
      %148 = math.tanh %146 : vector<16x16xf32>
      %149 = arith.mulf %147, %148 : vector<16x16xf32>
      %150 = vector.extract_strided_slice %arg15 {offsets = [0, 1], sizes = [2, 15], strides = [1, 1]} : vector<2x16xf32> to vector<2x15xf32>
      %151 = vector.extract_strided_slice %arg15 {offsets = [0, 0], sizes = [2, 1], strides = [1, 1]} : vector<2x16xf32> to vector<2x1xf32>
      %152 = tpu.concatenate %150, %151 in 1 : vector<2x15xf32>, vector<2x1xf32> -> vector<2x16xf32>
      %153 = vector.extract_strided_slice %arg15 {offsets = [0, 15], sizes = [2, 1], strides = [1, 1]} : vector<2x16xf32> to vector<2x1xf32>
      %154 = vector.extract_strided_slice %arg15 {offsets = [0, 0], sizes = [2, 15], strides = [1, 1]} : vector<2x16xf32> to vector<2x15xf32>
      %155 = tpu.concatenate %153, %154 in 1 : vector<2x1xf32>, vector<2x15xf32> -> vector<2x16xf32>
      %cst_63 = arith.constant 0.000000e+00 : f32
      %156 = vector.broadcast %cst_63 : f32 to vector<16x16xf32>
      %cst_64 = arith.constant 0.000000e+00 : f32
      %157 = vector.broadcast %cst_64 : f32 to vector<2x16xf32>
      %158 = vector.broadcast %105 : vector<1x16xf32> to vector<2x16xf32>
      %159 = arith.mulf %158, %arg15 : vector<2x16xf32>
      %160 = arith.addf %157, %159 : vector<2x16xf32>
      %161 = vector.broadcast %109 : vector<1x16xf32> to vector<2x16xf32>
      %162 = arith.mulf %161, %155 : vector<2x16xf32>
      %163 = arith.addf %160, %162 : vector<2x16xf32>
      %164 = vector.extract_strided_slice %arg15 {offsets = [0, 0], sizes = [1, 16], strides = [1, 1]} : vector<2x16xf32> to vector<1x16xf32>
      %165 = vector.extract_strided_slice %163 {offsets = [0, 0], sizes = [1, 16], strides = [1, 1]} : vector<2x16xf32> to vector<1x16xf32>
      %166 = arith.subf %164, %165 : vector<1x16xf32>
      %167 = vector.extract_strided_slice %arg15 {offsets = [1, 0], sizes = [1, 16], strides = [1, 1]} : vector<2x16xf32> to vector<1x16xf32>
      %168 = vector.extract_strided_slice %163 {offsets = [1, 0], sizes = [1, 16], strides = [1, 1]} : vector<2x16xf32> to vector<1x16xf32>
      %169 = arith.subf %167, %168 : vector<1x16xf32>
      %170 = vector.broadcast %21 : vector<16x1xf32> to vector<16x16xf32>
      %171 = vector.broadcast %166 : vector<1x16xf32> to vector<16x16xf32>
      %172 = arith.mulf %170, %171 : vector<16x16xf32>
      %173 = vector.broadcast %23 : vector<16x1xf32> to vector<16x16xf32>
      %174 = vector.broadcast %169 : vector<1x16xf32> to vector<16x16xf32>
      %175 = arith.mulf %173, %174 : vector<16x16xf32>
      %176 = arith.addf %172, %175 : vector<16x16xf32>
      %177 = arith.addf %176, %26 : vector<16x16xf32>
      %cst_65 = arith.constant 0.000000e+00 : f32
      %178 = vector.broadcast %cst_65 : f32 to vector<16x16xf32>
      %179 = arith.maximumf %177, %178 : vector<16x16xf32>
      %180 = vector.extract_strided_slice %71 {offsets = [0, 0], sizes = [1, 16], strides = [1, 1]} : vector<2x16xf32> to vector<1x16xf32>
      %181 = vector.broadcast %180 : vector<1x16xf32> to vector<16x16xf32>
      %182 = arith.mulf %181, %179 : vector<16x16xf32>
      %183 = arith.addf %156, %182 : vector<16x16xf32>
      %cst_66 = arith.constant 0.000000e+00 : f32
      %184 = vector.broadcast %cst_66 : f32 to vector<2x16xf32>
      %185 = vector.broadcast %105 : vector<1x16xf32> to vector<2x16xf32>
      %186 = arith.mulf %185, %152 : vector<2x16xf32>
      %187 = arith.addf %184, %186 : vector<2x16xf32>
      %188 = vector.broadcast %109 : vector<1x16xf32> to vector<2x16xf32>
      %189 = arith.mulf %188, %arg15 : vector<2x16xf32>
      %190 = arith.addf %187, %189 : vector<2x16xf32>
      %191 = vector.extract_strided_slice %arg15 {offsets = [0, 0], sizes = [1, 16], strides = [1, 1]} : vector<2x16xf32> to vector<1x16xf32>
      %192 = vector.extract_strided_slice %190 {offsets = [0, 0], sizes = [1, 16], strides = [1, 1]} : vector<2x16xf32> to vector<1x16xf32>
      %193 = arith.subf %191, %192 : vector<1x16xf32>
      %194 = vector.extract_strided_slice %arg15 {offsets = [1, 0], sizes = [1, 16], strides = [1, 1]} : vector<2x16xf32> to vector<1x16xf32>
      %195 = vector.extract_strided_slice %190 {offsets = [1, 0], sizes = [1, 16], strides = [1, 1]} : vector<2x16xf32> to vector<1x16xf32>
      %196 = arith.subf %194, %195 : vector<1x16xf32>
      %197 = vector.broadcast %21 : vector<16x1xf32> to vector<16x16xf32>
      %198 = vector.broadcast %193 : vector<1x16xf32> to vector<16x16xf32>
      %199 = arith.mulf %197, %198 : vector<16x16xf32>
      %200 = vector.broadcast %23 : vector<16x1xf32> to vector<16x16xf32>
      %201 = vector.broadcast %196 : vector<1x16xf32> to vector<16x16xf32>
      %202 = arith.mulf %200, %201 : vector<16x16xf32>
      %203 = arith.addf %199, %202 : vector<16x16xf32>
      %204 = arith.addf %203, %26 : vector<16x16xf32>
      %cst_67 = arith.constant 0.000000e+00 : f32
      %205 = vector.broadcast %cst_67 : f32 to vector<16x16xf32>
      %206 = arith.maximumf %204, %205 : vector<16x16xf32>
      %207 = vector.extract_strided_slice %71 {offsets = [1, 0], sizes = [1, 16], strides = [1, 1]} : vector<2x16xf32> to vector<1x16xf32>
      %208 = vector.broadcast %207 : vector<1x16xf32> to vector<16x16xf32>
      %209 = arith.mulf %208, %206 : vector<16x16xf32>
      %210 = arith.addf %183, %209 : vector<16x16xf32>
      %cst_68 = arith.constant dense<0.000000e+00> : vector<16x16xf32>
      %211 = tpu.matmul %27, %210, %cst_68 {dimension_numbers = #tpu.dot_dimension_numbers<[1], [0], [0], [1], [0, 0, 1, 1], [], []>} : vector<16x16xf32>, vector<16x16xf32>, vector<16x16xf32> -> vector<16x16xf32>
      %cst_69 = arith.constant dense<0.000000e+00> : vector<16x16xf32>
      %212 = tpu.matmul %28, %149, %cst_69 {dimension_numbers = #tpu.dot_dimension_numbers<[1], [0], [0], [1], [0, 0, 1, 1], [], []>} : vector<16x16xf32>, vector<16x16xf32>, vector<16x16xf32> -> vector<16x16xf32>
      %213 = arith.addf %211, %212 : vector<16x16xf32>
      %214 = arith.addf %213, %31 : vector<16x16xf32>
      %cst_70 = arith.constant 0.000000e+00 : f32
      %215 = vector.broadcast %cst_70 : f32 to vector<16x16xf32>
      %216 = arith.maximumf %214, %215 : vector<16x16xf32>
      %217 = arith.addf %149, %216 : vector<16x16xf32>
      %cst_71 = arith.constant dense<0.000000e+00> : vector<16x16xf32>
      %218 = tpu.matmul %32, %217, %cst_71 {dimension_numbers = #tpu.dot_dimension_numbers<[1], [0], [0], [1], [0, 0, 1, 1], [], []>} : vector<16x16xf32>, vector<16x16xf32>, vector<16x16xf32> -> vector<16x16xf32>
      %219 = arith.addf %218, %84 : vector<16x16xf32>
      %cst_72 = arith.constant 0.000000e+00 : f32
      %220 = vector.broadcast %cst_72 : f32 to vector<16x16xf32>
      %221 = arith.maximumf %219, %220 : vector<16x16xf32>
      %cst_73 = arith.constant dense<0.000000e+00> : vector<2x16xf32>
      %222 = tpu.matmul %37, %221, %cst_73 {dimension_numbers = #tpu.dot_dimension_numbers<[1], [0], [0], [1], [0, 0, 1, 1], [], []>} : vector<2x16xf32>, vector<16x16xf32>, vector<2x16xf32> -> vector<2x16xf32>
      %223 = arith.addf %222, %41 : vector<2x16xf32>
      %cst_74 = arith.constant dense<0.000000e+00> : vector<2x16xf32>
      %224 = tpu.matmul %38, %221, %cst_74 {dimension_numbers = #tpu.dot_dimension_numbers<[1], [0], [0], [1], [0, 0, 1, 1], [], []>} : vector<2x16xf32>, vector<16x16xf32>, vector<2x16xf32> -> vector<2x16xf32>
      %225 = arith.addf %224, %44 : vector<2x16xf32>
      %cst_75 = arith.constant -9.000000e+00 : f32
      %cst_76 = arith.constant 4.000000e+00 : f32
      %226 = vector.broadcast %cst_75 : f32 to vector<2x16xf32>
      %227 = arith.maximumf %226, %225 : vector<2x16xf32>
      %228 = vector.broadcast %cst_76 : f32 to vector<2x16xf32>
      %229 = arith.minimumf %228, %227 : vector<2x16xf32>
      %230 = math.exp %229 : vector<2x16xf32>
      %231 = arith.index_cast %arg10 : i32 to index
      %c0_77 = arith.constant 0 : index
      %c0_78 = arith.constant 0 : index
      %232 = vector.load %arg5[%231, %c0_77, %c0_78] : memref<12x2x16xf32, #tpu.memory_space<vmem>>, vector<1x2x16xf32>
      %233 = vector.shape_cast %232 : vector<1x2x16xf32> to vector<2x16xf32>
      %234 = arith.mulf %230, %233 : vector<2x16xf32>
      %235 = arith.addf %223, %234 : vector<2x16xf32>
      %cst_79 = arith.constant -2.000000e-01 : f32
      %cst_80 = arith.constant 4.000000e-01 : f32
      %236 = vector.broadcast %cst_79 : f32 to vector<2x16xf32>
      %237 = arith.maximumf %236, %235 : vector<2x16xf32>
      %238 = vector.broadcast %cst_80 : f32 to vector<2x16xf32>
      %239 = arith.minimumf %238, %237 : vector<2x16xf32>
      %240 = arith.subf %223, %239 : vector<2x16xf32>
      %241 = arith.mulf %240, %240 : vector<2x16xf32>
      %cst_81 = arith.constant dense<0.000000e+00> : vector<16xf32>
      %242 = vector.multi_reduction <add>, %241, %cst_81 [0] : vector<2x16xf32> to vector<16xf32>
      %243 = vector.shape_cast %242 : vector<16xf32> to vector<1x16xf32>
      %244 = arith.addf %arg16, %243 : vector<1x16xf32>
      %245 = arith.addf %arg15, %239 : vector<2x16xf32>
      %246 = arith.index_cast %arg10 : i32 to index
      %c0_82 = arith.constant 0 : index
      %c0_83 = arith.constant 0 : index
      %247 = vector.load %arg7[%246, %c0_82, %c0_83] : memref<12x2x16xf32, #tpu.memory_space<vmem>>, vector<1x2x16xf32>
      %248 = vector.shape_cast %247 : vector<1x2x16xf32> to vector<2x16xf32>
      %249 = vector.shape_cast %239 : vector<2x16xf32> to vector<1x2x16xf32>
      tpu.vector_store %arg7[%246, %c0_82, %c0_83], %249 {strides = array<i32>} : memref<12x2x16xf32, #tpu.memory_space<vmem>>, vector<1x2x16xf32>,
      scf.yield %149, %146, %216, %239, %245, %244 : vector<16x16xf32>, vector<16x16xf32>, vector<16x16xf32>, vector<2x16xf32>, vector<2x16xf32>, vector<1x16xf32>
    }
    %c12_i32_55 = arith.constant 12 : i32
    %c0_56 = arith.constant 0 : index
    %c0_57 = arith.constant 0 : index
    %115 = vector.load %arg8[%c0_56, %c0_57] : memref<1x16xf32, #tpu.memory_space<vmem>>, vector<1x16xf32>
    tpu.vector_store %arg8[%c0_56, %c0_57], %114#5 {strides = array<i32>} : memref<1x16xf32, #tpu.memory_space<vmem>>, vector<1x16xf32>,
    return
  }
  func.func @transform_0(%arg0: i32) -> (i32, i32, i32) {
    %c0_i32 = arith.constant 0 : i32
    %c0_i32_0 = arith.constant 0 : i32
    %c0_i32_1 = arith.constant 0 : i32
    return %c0_i32, %c0_i32_0, %arg0 : i32, i32, i32
  }
  func.func @transform_1(%arg0: i32) -> (i32, i32) {
    %c0_i32 = arith.constant 0 : i32
    %c0_i32_0 = arith.constant 0 : i32
    return %c0_i32, %arg0 : i32, i32
  }
  func.func @transform_2(%arg0: i32) -> (i32, i32) {
    %c0_i32 = arith.constant 0 : i32
    %c0_i32_0 = arith.constant 0 : i32
    return %c0_i32, %arg0 : i32, i32
  }
  func.func @transform_3(%arg0: i32) -> (i32, i32) {
    %c0_i32 = arith.constant 0 : i32
    %c0_i32_0 = arith.constant 0 : i32
    return %c0_i32, %arg0 : i32, i32
  }
  func.func @transform_4(%arg0: i32) -> (i32, i32, i32) {
    %c0_i32 = arith.constant 0 : i32
    %c0_i32_0 = arith.constant 0 : i32
    %c0_i32_1 = arith.constant 0 : i32
    return %c0_i32, %c0_i32_0, %arg0 : i32, i32, i32
  }
  func.func @transform_5(%arg0: i32) -> (i32, i32) {
    %c0_i32 = arith.constant 0 : i32
    %c0_i32_0 = arith.constant 0 : i32
    %c0_i32_1 = arith.constant 0 : i32
    return %c0_i32, %c0_i32_0 : i32, i32
  }
  func.func @transform_6(%arg0: i32) -> (i32, i32, i32) {
    %c0_i32 = arith.constant 0 : i32
    %c0_i32_0 = arith.constant 0 : i32
    %c0_i32_1 = arith.constant 0 : i32
    return %c0_i32, %c0_i32_0, %arg0 : i32, i32, i32
  }
  func.func @transform_7(%arg0: i32) -> (i32, i32) {
    %c0_i32 = arith.constant 0 : i32
    %c0_i32_0 = arith.constant 0 : i32
    return %c0_i32, %arg0 : i32, i32
  }
}

</mosaic_0001>

<llo_original>
// kernel: tpu_custom_call.1
$region0: #{tpu_custom_call.1}
  #allocation0 [shape = 'u32[]', space=smem, size = 0x4, offset = 0x4, fixed_abs, tag = 'smem constant byte address 0x4 - core index']
  #allocation1 [shape = 'u32[144,128]{1,0:T(1,128)}', space=vmem, size = 0x12000, scoped, tag = 'internal scratch']
  #allocation2 [shape = 'f32[8,16,16]{2,1,0:T(8,128)}', space=vmem, size = 0x10000, scoped, tag = 'scratch operand']
  %s0 = inlined_call_operand.vmem [shape: f32[8,2,16], index: 0, kind: input, shape index: {}]
  %s1 = inlined_call_operand.vmem [shape: f32[2,16], index: 1, kind: input, shape index: {}]
  %s2 = inlined_call_operand.vmem [shape: f32[2,16], index: 2, kind: input, shape index: {}]
  %s3 = inlined_call_operand.vmem [shape: f32[2,16], index: 3, kind: input, shape index: {}]
  %s4 = inlined_call_operand.vmem [shape: f32[12,2,16], index: 4, kind: input, shape index: {}]
  %s5 = inlined_call_operand.vmem [shape: f32[624,16], index: 5, kind: input, shape index: {}]
  %s6 = inlined_call_operand.hbm [shape: f32[12,2,16], index: 6, kind: output, shape index: {0}]
  %s7 = inlined_call_operand.hbm [shape: f32[1,16], index: 7, kind: output, shape index: {1}]
  %8 = xla_tuple %s6, %s7
  %s9 = sld [smem:[#allocation0]]
  $region56: #{tpu_custom_call.1} parent=0
    _
  %s11 = ssub.s32 1, %s9
  %s12 = scalar_select 0, %s11, %s9
  $region1: #{tpu_custom_call.1} parent=0
    #allocation3 [shape = 'u8[12288]{0}', space=vmem, size = 0x3000, scoped, tag = 'output window, operand 0, single buffered']
    #allocation4 [shape = 's32[1]{0}', space=sflag, size = 0x4, scoped, tag = 'scoped memory for tpu_custom_call.1']
    #allocation5 [shape = 'u8[512]{0}', space=vmem, size = 0x400, scoped, tag = 'output window, operand 1, single buffered']
    #allocation6 [shape = 's32[1]{0}', space=sflag, size = 0x4, scoped, tag = 'scoped memory for tpu_custom_call.1']
    %13 = vsyncpa [#allocation4], 0
    %14 = vsyncpa [#allocation6], 0
    // Predicated region
    $region2: #{tpu_custom_call.1} parent=1 // pred_check
      _
    $region3: #{tpu_custom_call.1} parent=1 // pred_check_branch
      %16 = sbr.rel (0) target = $region5
    $region4: #{tpu_custom_call.1} parent=1 // pred_region
      _
    $region5: #{tpu_custom_call.1} parent=1 // pred_fallthru
      _
    // Predicated region
    $region6: #{tpu_custom_call.1} parent=1 // pred_check
      _
    $region7: #{tpu_custom_call.1} parent=1 // pred_check_branch
      %18 = sbr.rel (0) target = $region9
    $region8: #{tpu_custom_call.1} parent=1 // pred_region
      _
    $region9: #{tpu_custom_call.1} parent=1 // pred_fallthru
      _
    // Predicated region
    $region10: #{tpu_custom_call.1} parent=1 // pred_check
      _
    $region11: #{tpu_custom_call.1} parent=1 // pred_check_branch
      %20 = sbr.rel (0) target = $region13
    $region12: #{tpu_custom_call.1} parent=1 // pred_region
      _
    $region13: #{tpu_custom_call.1} parent=1 // pred_fallthru
      _
    // Predicated region
    $region14: #{tpu_custom_call.1} parent=1 // pred_check
      _
    $region15: #{tpu_custom_call.1} parent=1 // pred_check_branch
      %22 = sbr.rel (0) target = $region17
    $region16: #{tpu_custom_call.1} parent=1 // pred_region
      _
    $region17: #{tpu_custom_call.1} parent=1 // pred_fallthru
      _
    // Predicated region
    $region18: #{tpu_custom_call.1} parent=1 // pred_check
      _
    $region19: #{tpu_custom_call.1} parent=1 // pred_check_branch
      %24 = sbr.rel (0) target = $region21
    $region20: #{tpu_custom_call.1} parent=1 // pred_region
      _
    $region21: #{tpu_custom_call.1} parent=1 // pred_fallthru
      _
    // Predicated region
    $region22: #{tpu_custom_call.1} parent=1 // pred_check
      _
    $region23: #{tpu_custom_call.1} parent=1 // pred_check_branch
      %26 = sbr.rel (0) target = $region25
    $region24: #{tpu_custom_call.1} parent=1 // pred_region
      _
    $region25: #{tpu_custom_call.1} parent=1 // pred_fallthru
      _
    %v27 = vld [vmem:[%s5] sm:$0xff]
    %v28 = vld [vmem:[%s5 + $0x8] sm:$0xff]
    %v29 = vld [vmem:[%s5 + $0x10] sm:$0xff]
    %v30 = vld [vmem:[%s5 + $0x18] sm:$0xff]
    %v31 = vld [vmem:[%s5 + $0x20] sm:$0xff]
    %v32 = vld [vmem:[%s5 + $0x28] sm:$0xff]
    %v33 = vld [vmem:[%s5 + $0x30] sm:$0xff]
    %v34 = vld [vmem:[%s5 + $0x38] sm:$0xff]
    %v35 = vld [vmem:[%s5 + $0x40] sm:$0xff]
    %v36 = vld [vmem:[%s5 + $0x48] sm:$0xff]
    %v37 = vld [vmem:[%s5 + $0x50] sm:$0xff]
    %v38 = vld [vmem:[%s5 + $0x58] sm:$0xff]
    %v39 = vld [vmem:[%s5 + $0x60] sm:$0xff]
    %v40 = vld [vmem:[%s5 + $0x68] sm:$0xff]
    %v41 = vld [vmem:[%s5 + $0x70] sm:$0xff]
    %v42 = vld [vmem:[%s5 + $0x78] sm:$0xff]
    %v43 = vld [vmem:[%s5 + $0x80] sm:$0xff]
    %v44 = vld [vmem:[%s5 + $0x88] sm:$0xff]
    %v45 = vld [vmem:[%s5 + $0x90] sm:$0xff]
    %v46 = vld [vmem:[%s5 + $0x98] sm:$0xff]
    %v47 = vld [vmem:[%s5 + $0xa0] sm:$0xff]
    %v48 = vld [vmem:[%s5 + $0xa8] sm:$0xff]
    %v49 = vld [vmem:[%s5 + $0xb0] sm:$0xff]
    %v50 = vld [vmem:[%s5 + $0xb8] sm:$0xff]
    %v51 = vld [vmem:[%s5 + $0xc0] sm:$0xff]
    %v52 = vld [vmem:[%s5 + $0xc8] sm:$0xff]
    %v53 = vld [vmem:[%s5 + $0xd0] sm:$0xff]
    %v54 = vld [vmem:[%s5 + $0xd8] sm:$0xff]
    %56 = vset.pattern.permute.xlu0 0
    %57 = vperm.xlu0 %56, %v47
    %v58 = vpop.permute.xlu0 %57
    %61 = vset.pattern.permute.xlu0 0
    %62 = vperm.xlu0 %61, %v48
    %v63 = vpop.permute.xlu0 %62
    %66 = vset.pattern.permute.xlu0 0
    %67 = vperm.xlu0 %66, %v49
    %v68 = vpop.permute.xlu0 %67
    %71 = vset.pattern.permute.xlu0 0
    %72 = vperm.xlu0 %71, %v50
    %v73 = vpop.permute.xlu0 %72
    %76 = vset.pattern.permute.xlu0 0
    %77 = vperm.xlu0 %76, %v51
    %v78 = vpop.permute.xlu0 %77
    %81 = vset.pattern.permute.xlu0 0
    %82 = vperm.xlu0 %81, %v52
    %v83 = vpop.permute.xlu0 %82
    %86 = vset.pattern.permute.xlu0 0
    %87 = vperm.xlu0 %86, %v53
    %v88 = vpop.permute.xlu0 %87
    %91 = vset.pattern.permute.xlu0 0
    %92 = vperm.xlu0 %91, %v54
    %v93 = vpop.permute.xlu0 %92
    %v95 = vld [vmem:[%s5 + $0xe0] sm:$0xff]
    %v96 = vld [vmem:[%s5 + $0xe8] sm:$0xff]
    %v97 = vld [vmem:[%s5 + $0xf0] sm:$0xff]
    %v98 = vld [vmem:[%s5 + $0xf8] sm:$0xff]
    %v99 = vld [vmem:[%s5 + $0x100] sm:$0xff]
    %v100 = vld [vmem:[%s5 + $0x108] sm:$0xff]
    %102 = vset.pattern.permute.xlu0 0
    %103 = vperm.xlu0 %102, %v99
    %v104 = vpop.permute.xlu0 %103
    %107 = vset.pattern.permute.xlu0 0
    %108 = vperm.xlu0 %107, %v100
    %v109 = vpop.permute.xlu0 %108
    %v111 = vld [vmem:[%s5 + $0x110] sm:$0xff]
    %v112 = vld [vmem:[%s5 + $0x118] sm:$0xff]
    %v113 = vld [vmem:[%s5 + $0x120] sm:$0xff]
    %v114 = vld [vmem:[%s5 + $0x128] sm:$0xff]
    %v115 = vld [vmem:[%s5 + $0x130] sm:$0xff]
    %v116 = vld [vmem:[%s5 + $0x138] sm:$0xff]
    %v117 = vld [vmem:[%s5 + $0x140] sm:$0xff]
    %v118 = vld [vmem:[%s5 + $0x148] sm:$0xff]
    %v119 = vld [vmem:[%s5 + $0x150] sm:$0xff]
    %v120 = vld [vmem:[%s5 + $0x158] sm:$0xff]
    %v121 = vld [vmem:[%s5 + $0x160] sm:$0xff]
    %v122 = vld [vmem:[%s5 + $0x168] sm:$0xff]
    %v123 = vld [vmem:[%s5 + $0x170] sm:$0xff]
    %v124 = vld [vmem:[%s5 + $0x178] sm:$0xff]
    %v125 = vld [vmem:[%s5 + $0x180] sm:$0xff]
    %v126 = vld [vmem:[%s5 + $0x188] sm:$0xff]
    %v127 = vld [vmem:[%s5 + $0x190] sm:$0xff]
    %v128 = vld [vmem:[%s5 + $0x198] sm:$0xff]
    %v129 = vld [vmem:[%s5 + $0x1a0] sm:$0xff]
    %v130 = vld [vmem:[%s5 + $0x1a8] sm:$0xff]
    %v131 = vld [vmem:[%s5 + $0x1b0] sm:$0xff]
    %v132 = vld [vmem:[%s5 + $0x1b8] sm:$0xff]
    %v133 = vld [vmem:[%s5 + $0x1c0] sm:$0xff]
    %v134 = vld [vmem:[%s5 + $0x1c8] sm:$0xff]
    %136 = vset.pattern.permute.xlu0 0
    %137 = vperm.xlu0 %136, %v127
    %v138 = vpop.permute.xlu0 %137
    %141 = vset.pattern.permute.xlu0 0
    %142 = vperm.xlu0 %141, %v128
    %v143 = vpop.permute.xlu0 %142
    %146 = vset.pattern.permute.xlu0 0
    %147 = vperm.xlu0 %146, %v129
    %v148 = vpop.permute.xlu0 %147
    %151 = vset.pattern.permute.xlu0 0
    %152 = vperm.xlu0 %151, %v130
    %v153 = vpop.permute.xlu0 %152
    %156 = vset.pattern.permute.xlu0 0
    %157 = vperm.xlu0 %156, %v131
    %v158 = vpop.permute.xlu0 %157
    %161 = vset.pattern.permute.xlu0 0
    %162 = vperm.xlu0 %161, %v132
    %v163 = vpop.permute.xlu0 %162
    %166 = vset.pattern.permute.xlu0 0
    %167 = vperm.xlu0 %166, %v133
    %v168 = vpop.permute.xlu0 %167
    %171 = vset.pattern.permute.xlu0 0
    %172 = vperm.xlu0 %171, %v134
    %v173 = vpop.permute.xlu0 %172
    %v175 = vld [vmem:[%s5 + $0x1d0] sm:$0xff]
    %v176 = vld [vmem:[%s5 + $0x1d8] sm:$0xff]
    %v177 = vld [vmem:[%s5 + $0x1e0] sm:$0xff]
    %v178 = vld [vmem:[%s5 + $0x1e8] sm:$0xff]
    %180 = vset.pattern.permute.xlu0 0
    %181 = vperm.xlu0 %180, %v177
    %v182 = vpop.permute.xlu0 %181
    %185 = vset.pattern.permute.xlu0 0
    %186 = vperm.xlu0 %185, %v178
    %v187 = vpop.permute.xlu0 %186
    %v189 = vld [vmem:[%s5 + $0x1f0] sm:$0xff]
    %v190 = vld [vmem:[%s5 + $0x1f8] sm:$0xff]
    %v191 = vld [vmem:[%s5 + $0x200] sm:$0xff]
    %v192 = vld [vmem:[%s5 + $0x208] sm:$0xff]
    %v193 = vld [vmem:[%s5 + $0x210] sm:$0xff]
    %v194 = vld [vmem:[%s5 + $0x218] sm:$0xff]
    %196 = vset.pattern.permute.xlu0 0
    %197 = vperm.xlu0 %196, %v193
    %v198 = vpop.permute.xlu0 %197
    %201 = vset.pattern.permute.xlu0 0
    %202 = vperm.xlu0 %201, %v194
    %v203 = vpop.permute.xlu0 %202
    %v205 = vld [vmem:[%s5 + $0x220] sm:$0xff]
    %v206 = vld [vmem:[%s5 + $0x228] sm:$0xff]
    %v207 = vld [vmem:[%s5 + $0x230] sm:$0xff]
    %v208 = vld [vmem:[%s5 + $0x238] sm:$0xff]
    %v209 = vld [vmem:[%s5 + $0x240] sm:$0xff]
    %v210 = vld [vmem:[%s5 + $0x248] sm:$0xff]
    %212 = vset.pattern.permute.xlu0 0
    %213 = vperm.xlu0 %212, %v209
    %v214 = vpop.permute.xlu0 %213
    %217 = vset.pattern.permute.xlu0 0
    %218 = vperm.xlu0 %217, %v210
    %v219 = vpop.permute.xlu0 %218
    %v221 = vld [vmem:[%s5 + $0x250] sm:$0x3]
    %v222 = vld [vmem:[%s5 + $0x260] sm:$0x3]
    %v223 = vld [vmem:[%s5 + $0x258] sm:$0x3]
    %225 = vset.pattern.permute.xlu0 0
    %226 = vperm.xlu0 %225, %v223
    %v227 = vpop.permute.xlu0 %226
    %v229 = vld [vmem:[%s5 + $0x268] sm:$0x3]
    %231 = vset.pattern.permute.xlu0 0
    %232 = vperm.xlu0 %231, %v229
    %v233 = vpop.permute.xlu0 %232
    %v235 = vld [vmem:[%s0] sm:$0x3]
    %v236 = vld [vmem:[%s0 + $0x2] sm:$0x3]
    %v237 = vld [vmem:[%s0 + $0x4] sm:$0x3]
    %v238 = vld [vmem:[%s0 + $0x6] sm:$0x3]
    %v239 = vld [vmem:[%s0 + $0x8] sm:$0x3]
    %v240 = vld [vmem:[%s0 + $0xa] sm:$0x3]
    %v241 = vld [vmem:[%s0 + $0xc] sm:$0x3]
    %v242 = vld [vmem:[%s0 + $0xe] sm:$0x3]
    %v243 = vlaneseq
    %v244 = vshrl.u32 %v243, 7
    %v245 = vsub.s32 0, %v244
    %v246 = vrot.slane %v235, %v245
    %v247 = vlaneseq
    %v248 = vshrl.u32 %v247, 7
    %v249 = vsub.s32 0, %v248
    %v250 = vrot.slane %v236, %v249
    %v251 = vlaneseq
    %v252 = vshrl.u32 %v251, 7
    %v253 = vsub.s32 0, %v252
    %v254 = vrot.slane %v237, %v253
    %v255 = vlaneseq
    %v256 = vshrl.u32 %v255, 7
    %v257 = vsub.s32 0, %v256
    %v258 = vrot.slane %v238, %v257
    %v259 = vlaneseq
    %v260 = vshrl.u32 %v259, 7
    %v261 = vsub.s32 0, %v260
    %v262 = vrot.slane %v239, %v261
    %v263 = vlaneseq
    %v264 = vshrl.u32 %v263, 7
    %v265 = vsub.s32 0, %v264
    %v266 = vrot.slane %v240, %v265
    %v267 = vlaneseq
    %v268 = vshrl.u32 %v267, 7
    %v269 = vsub.s32 0, %v268
    %v270 = vrot.slane %v241, %v269
    %v271 = vlaneseq
    %v272 = vshrl.u32 %v271, 7
    %v273 = vsub.s32 0, %v272
    %v274 = vrot.slane %v242, %v273
    %276 = vset.pattern.permute.xlu0 0
    %277 = vperm.xlu0 %276, %v27
    %v278 = vpop.permute.xlu0 %277
    %281 = vset.pattern.permute.xlu0 0
    %282 = vperm.xlu0 %281, %v28
    %v283 = vpop.permute.xlu0 %282
    %v285 = vmul.f32 %v246, %v278
    %v286 = vmul.f32 %v246, %v283
    %v287 = vmul.f32 %v250, %v278
    %v288 = vmul.f32 %v250, %v283
    %v289 = vmul.f32 %v254, %v278
    %v290 = vmul.f32 %v254, %v283
    %v291 = vmul.f32 %v258, %v278
    %v292 = vmul.f32 %v258, %v283
    %v293 = vmul.f32 %v262, %v278
    %v294 = vmul.f32 %v262, %v283
    %v295 = vmul.f32 %v266, %v278
    %v296 = vmul.f32 %v266, %v283
    %v297 = vmul.f32 %v270, %v278
    %v298 = vmul.f32 %v270, %v283
    %v299 = vmul.f32 %v274, %v278
    %v300 = vmul.f32 %v274, %v283
    %v301 = vlaneseq
    %v302 = vshrl.u32 %v301, 7
    %v303 = vsub.s32 1, %v302
    %v304 = vrot.slane %v235, %v303
    %v305 = vlaneseq
    %v306 = vshrl.u32 %v305, 7
    %v307 = vsub.s32 1, %v306
    %v308 = vrot.slane %v236, %v307
    %v309 = vlaneseq
    %v310 = vshrl.u32 %v309, 7
    %v311 = vsub.s32 1, %v310
    %v312 = vrot.slane %v237, %v311
    %v313 = vlaneseq
    %v314 = vshrl.u32 %v313, 7
    %v315 = vsub.s32 1, %v314
    %v316 = vrot.slane %v238, %v315
    %v317 = vlaneseq
    %v318 = vshrl.u32 %v317, 7
    %v319 = vsub.s32 1, %v318
    %v320 = vrot.slane %v239, %v319
    %v321 = vlaneseq
    %v322 = vshrl.u32 %v321, 7
    %v323 = vsub.s32 1, %v322
    %v324 = vrot.slane %v240, %v323
    %v325 = vlaneseq
    %v326 = vshrl.u32 %v325, 7
    %v327 = vsub.s32 1, %v326
    %v328 = vrot.slane %v241, %v327
    %v329 = vlaneseq
    %v330 = vshrl.u32 %v329, 7
    %v331 = vsub.s32 1, %v330
    %v332 = vrot.slane %v242, %v331
    %333 = vset.pattern.permute.xlu0 1
    %334 = vperm.xlu0 %333, %v27
    %v335 = vpop.permute.xlu0 %334
    %337 = vset.pattern.permute.xlu0 1
    %338 = vperm.xlu0 %337, %v28
    %v339 = vpop.permute.xlu0 %338
    %v341 = vmul.f32 %v304, %v335
    %v342 = vmul.f32 %v304, %v339
    %v343 = vmul.f32 %v308, %v335
    %v344 = vmul.f32 %v308, %v339
    %v345 = vmul.f32 %v312, %v335
    %v346 = vmul.f32 %v312, %v339
    %v347 = vmul.f32 %v316, %v335
    %v348 = vmul.f32 %v316, %v339
    %v349 = vmul.f32 %v320, %v335
    %v350 = vmul.f32 %v320, %v339
    %v351 = vmul.f32 %v324, %v335
    %v352 = vmul.f32 %v324, %v339
    %v353 = vmul.f32 %v328, %v335
    %v354 = vmul.f32 %v328, %v339
    %v355 = vmul.f32 %v332, %v335
    %v356 = vmul.f32 %v332, %v339
    %v357 = vadd.f32 %v285, %v341
    %v358 = vadd.f32 %v286, %v342
    %v359 = vadd.f32 %v287, %v343
    %v360 = vadd.f32 %v288, %v344
    %v361 = vadd.f32 %v289, %v345
    %v362 = vadd.f32 %v290, %v346
    %v363 = vadd.f32 %v291, %v347
    %v364 = vadd.f32 %v292, %v348
    %v365 = vadd.f32 %v293, %v349
    %v366 = vadd.f32 %v294, %v350
    %v367 = vadd.f32 %v295, %v351
    %v368 = vadd.f32 %v296, %v352
    %v369 = vadd.f32 %v297, %v353
    %v370 = vadd.f32 %v298, %v354
    %v371 = vadd.f32 %v299, %v355
    %v372 = vadd.f32 %v300, %v356
    %374 = vset.pattern.permute.xlu0 0
    %375 = vperm.xlu0 %374, %v29
    %v376 = vpop.permute.xlu0 %375
    %379 = vset.pattern.permute.xlu0 0
    %380 = vperm.xlu0 %379, %v30
    %v381 = vpop.permute.xlu0 %380
    %v383 = vadd.f32 %v357, %v376
    %v384 = vadd.f32 %v358, %v381
    %v385 = vadd.f32 %v359, %v376
    %v386 = vadd.f32 %v360, %v381
    %v387 = vadd.f32 %v361, %v376
    %v388 = vadd.f32 %v362, %v381
    %v389 = vadd.f32 %v363, %v376
    %v390 = vadd.f32 %v364, %v381
    %v391 = vadd.f32 %v365, %v376
    %v392 = vadd.f32 %v366, %v381
    %v393 = vadd.f32 %v367, %v376
    %v394 = vadd.f32 %v368, %v381
    %v395 = vadd.f32 %v369, %v376
    %v396 = vadd.f32 %v370, %v381
    %v397 = vadd.f32 %v371, %v376
    %v398 = vadd.f32 %v372, %v381
    %v399 = vmax.f32 %v383, 0.0
    %v400 = vmax.f32 %v384, 0.0
    %v401 = vmax.f32 %v385, 0.0
    %v402 = vmax.f32 %v386, 0.0
    %v403 = vmax.f32 %v387, 0.0
    %v404 = vmax.f32 %v388, 0.0
    %v405 = vmax.f32 %v389, 0.0
    %v406 = vmax.f32 %v390, 0.0
    %v407 = vmax.f32 %v391, 0.0
    %v408 = vmax.f32 %v392, 0.0
    %v409 = vmax.f32 %v393, 0.0
    %v410 = vmax.f32 %v394, 0.0
    %v411 = vmax.f32 %v395, 0.0
    %v412 = vmax.f32 %v396, 0.0
    %v413 = vmax.f32 %v397, 0.0
    %v414 = vmax.f32 %v398, 0.0
    %vm415 = vcmask 130048
    %416 = vst.msk [vmem:[#allocation2] sm:$0xff] %vm415, %v399
    %417 = vst.msk [vmem:[#allocation2 + $0x8] sm:$0xff] %vm415, %v400
    %418 = vst.msk [vmem:[#allocation2 + $0x10] sm:$0xff] %vm415, %v401
    %419 = vst.msk [vmem:[#allocation2 + $0x18] sm:$0xff] %vm415, %v402
    %420 = vst.msk [vmem:[#allocation2 + $0x20] sm:$0xff] %vm415, %v403
    %421 = vst.msk [vmem:[#allocation2 + $0x28] sm:$0xff] %vm415, %v404
    %422 = vst.msk [vmem:[#allocation2 + $0x30] sm:$0xff] %vm415, %v405
    %423 = vst.msk [vmem:[#allocation2 + $0x38] sm:$0xff] %vm415, %v406
    %424 = vst.msk [vmem:[#allocation2 + $0x40] sm:$0xff] %vm415, %v407
    %425 = vst.msk [vmem:[#allocation2 + $0x48] sm:$0xff] %vm415, %v408
    %426 = vst.msk [vmem:[#allocation2 + $0x50] sm:$0xff] %vm415, %v409
    %427 = vst.msk [vmem:[#allocation2 + $0x58] sm:$0xff] %vm415, %v410
    %428 = vst.msk [vmem:[#allocation2 + $0x60] sm:$0xff] %vm415, %v411
    %429 = vst.msk [vmem:[#allocation2 + $0x68] sm:$0xff] %vm415, %v412
    %430 = vst.msk [vmem:[#allocation2 + $0x70] sm:$0xff] %vm415, %v413
    %431 = vst.msk [vmem:[#allocation2 + $0x78] sm:$0xff] %vm415, %v414
    loop: start=0, step=1, limit=8
    $region26: #{tpu_custom_call.1} parent=1 // loop_pre_header
      _
    $region27: #{tpu_custom_call.1} parent=1 // loop_header
      %s433 = sphi 0, %s437
      %p434 = scmp.ge.s32.totalorder %s433, 8
      %v438 = vphi 0.0, %v758
      %v439 = vphi 0.0, %v759
      %v440 = vphi 0.0, %v754
      %v441 = vphi 0.0, %v755
    $region28: #{tpu_custom_call.1} parent=1 // loop_header_branch
      %436 = sbr.rel (%p434) target = $region32
    $region29: #{tpu_custom_call.1} parent=1 // loop_body
      %s442 = smul.u32 %s433, 16
      %s443 = scalar_lea.vmem [#allocation2], %s442
      %v444 = vld [vmem:[%s443] sm:$0xff]
      %v445 = vld [vmem:[%s443 + $0x8] sm:$0xff]
      %v447 = vsel %vm415, %v39, 0
      %v450 = vsel %vm415, %v40, 0
      %v453 = vsel %vm415, %v41, 0
      %v456 = vsel %vm415, %v42, 0
      %v459 = vsel %vm415, %v43, 0
      %v462 = vsel %vm415, %v44, 0
      %v465 = vsel %vm415, %v45, 0
      %v468 = vsel %vm415, %v46, 0
      %470 = vmatprep.subr.mxu0 0.0
      %471 = vmatpush1.msra.mxu0 %v438
      %472 = vmatprep.subr.mxu0 0.0
      %473 = vmatpush1.msra.mxu0 %v439
      %474 = vmatprep.subr.mxu0 0.0
      %475 = vmatpush1.msra.mxu0 0.0
      %476 = vmatprep.subr.mxu0 0.0
      %477 = vmatpush1.msra.mxu0 0.0
      %478 = vmatprep.subr.mxu0 0.0
      %479 = vmatpush1.msra.mxu0 0.0
      %480 = vmatprep.subr.mxu0 0.0
      %481 = vmatpush1.msra.mxu0 0.0
      %482 = vmatprep.subr.mxu0 0.0
      %483 = vmatpush1.msra.mxu0 0.0
      %484 = vmatprep.subr.mxu0 0.0
      %485 = vmatpush1.msra.mxu0 0.0
      %486 = vmatprep.subr.mxu0 0.0
      %487 = vmatpush1.msra.mxu0 0.0
      %488 = vmatprep.subr.mxu0 0.0
      %489 = vmatpush1.msra.mxu0 0.0
      %490 = vmatprep.subr.mxu0 0.0
      %491 = vmatpush1.msra.mxu0 0.0
      %492 = vmatprep.subr.mxu0 0.0
      %493 = vmatpush1.msra.mxu0 0.0
      %494 = vmatprep.subr.mxu0 0.0
      %495 = vmatpush1.msra.mxu0 0.0
      %496 = vmatprep.subr.mxu0 0.0
      %497 = vmatpush1.msra.mxu0 0.0
      %498 = vmatprep.subr.mxu0 0.0
      %499 = vmatpush1.msra.mxu0 0.0
      %500 = vmatprep.subr.mxu0 0.0
      %501 = vmatpush1.msra.mxu0 0.0
      %502 = vmatprep.subr.mxu0 0.0
      %503 = vmatpush1.msra.mxu0 0.0
      %504 = vmatprep.subr.mxu0 0.0
      %505 = vmatpush1.msra.mxu0 0.0
      %506 = vmatprep.subr.mxu0 0.0
      %507 = vmatpush1.msra.mxu0 0.0
      %508 = vmatprep.subr.mxu0 0.0
      %509 = vmatpush1.msra.mxu0 0.0
      %510 = vmatprep.subr.mxu0 0.0
      %511 = vmatpush1.msra.mxu0 0.0
      %512 = vmatprep.subr.mxu0 0.0
      %513 = vmatpush1.msra.mxu0 0.0
      %514 = vmatprep.subr.mxu0 0.0
      %515 = vmatpush1.msra.mxu0 0.0
      %516 = vmatprep.subr.mxu0 0.0
      %517 = vmatpush1.msra.mxu0 0.0
      %518 = vmatprep.subr.mxu0 0.0
      %519 = vmatpush1.msra.mxu0 0.0
      %520 = vmatprep.subr.mxu0 0.0
      %521 = vmatpush1.msra.mxu0 0.0
      %522 = vmatprep.subr.mxu0 0.0
      %523 = vmatpush1.msra.mxu0 0.0
      %524 = vmatprep.subr.mxu0 0.0
      %525 = vmatpush1.msra.mxu0 0.0
      %526 = vmatprep.subr.mxu0 0.0
      %527 = vmatpush1.msra.mxu0 0.0
      %528 = vmatprep.subr.mxu0 0.0
      %529 = vmatpush1.msra.mxu0 0.0
      %530 = vmatprep.subr.mxu0 0.0
      %531 = vmatpush1.msra.mxu0 0.0
      %532 = vmatprep.subr.mxu0 0.0
      %533 = vmatpush1.msra.mxu0 0.0
      %534 = vmatprep.mubr.f32.mxu0 0.0
      %535 = vmatmul.mubr.f32.gmra.mrb[0].mxu0 %v447
      %v536 = vpop.f32.mrb[0].mxu0
      %v537 = vadd.f32 0.0, %v536
      %v538 = vpop.f32.mrb[0].mxu0
      %539 = vmatprep.mubr.f32.mxu0 0.0
      %540 = vmatmul.mubr.f32.gmra.mrb[0].mxu0 %v450
      %v541 = vpop.f32.mrb[0].mxu0
      %v542 = vadd.f32 0.0, %v541
      %v543 = vpop.f32.mrb[0].mxu0
      %544 = vmatprep.mubr.f32.mxu0 0.0
      %545 = vmatmul.mubr.f32.gmra.mrb[0].mxu0 %v453
      %v546 = vpop.f32.mrb[0].mxu0
      %v547 = vadd.f32 0.0, %v546
      %v548 = vpop.f32.mrb[0].mxu0
      %549 = vmatprep.mubr.f32.mxu0 0.0
      %550 = vmatmul.mubr.f32.gmra.mrb[0].mxu0 %v456
      %v551 = vpop.f32.mrb[0].mxu0
      %v552 = vadd.f32 0.0, %v551
      %v553 = vpop.f32.mrb[0].mxu0
      %554 = vmatprep.mubr.f32.mxu0 0.0
      %555 = vmatmul.mubr.f32.gmra.mrb[0].mxu0 %v459
      %v556 = vpop.f32.mrb[0].mxu0
      %v557 = vadd.f32 0.0, %v556
      %v558 = vpop.f32.mrb[0].mxu0
      %559 = vmatprep.mubr.f32.mxu0 0.0
      %560 = vmatmul.mubr.f32.gmra.mrb[0].mxu0 %v462
      %v561 = vpop.f32.mrb[0].mxu0
      %v562 = vadd.f32 0.0, %v561
      %v563 = vpop.f32.mrb[0].mxu0
      %564 = vmatprep.mubr.f32.mxu0 0.0
      %565 = vmatmul.mubr.f32.gmra.mrb[0].mxu0 %v465
      %v566 = vpop.f32.mrb[0].mxu0
      %v567 = vadd.f32 0.0, %v566
      %v568 = vpop.f32.mrb[0].mxu0
      %569 = vmatprep.mubr.f32.mxu0 0.0
      %570 = vmatmul.mubr.f32.gmra.mrb[0].mxu0 %v468
      %v571 = vpop.f32.mrb[0].mxu0
      %v572 = vadd.f32 0.0, %v571
      %v573 = vpop.f32.mrb[0].mxu0
      %574 = vdwg.mxu0
      %v576 = vsel %vm415, %v31, 0
      %v579 = vsel %vm415, %v32, 0
      %v582 = vsel %vm415, %v33, 0
      %v585 = vsel %vm415, %v34, 0
      %v588 = vsel %vm415, %v35, 0
      %v591 = vsel %vm415, %v36, 0
      %v594 = vsel %vm415, %v37, 0
      %v597 = vsel %vm415, %v38, 0
      %599 = vmatprep.subr.mxu0 0.0
      %600 = vmatpush1.msra.mxu0 %v444
      %601 = vmatprep.subr.mxu0 0.0
      %602 = vmatpush1.msra.mxu0 %v445
      %603 = vmatprep.subr.mxu0 0.0
      %604 = vmatpush1.msra.mxu0 0.0
      %605 = vmatprep.subr.mxu0 0.0
      %606 = vmatpush1.msra.mxu0 0.0
      %607 = vmatprep.subr.mxu0 0.0
      %608 = vmatpush1.msra.mxu0 0.0
      %609 = vmatprep.subr.mxu0 0.0
      %610 = vmatpush1.msra.mxu0 0.0
      %611 = vmatprep.subr.mxu0 0.0
      %612 = vmatpush1.msra.mxu0 0.0
      %613 = vmatprep.subr.mxu0 0.0
      %614 = vmatpush1.msra.mxu0 0.0
      %615 = vmatprep.subr.mxu0 0.0
      %616 = vmatpush1.msra.mxu0 0.0
      %617 = vmatprep.subr.mxu0 0.0
      %618 = vmatpush1.msra.mxu0 0.0
      %619 = vmatprep.subr.mxu0 0.0
      %620 = vmatpush1.msra.mxu0 0.0
      %621 = vmatprep.subr.mxu0 0.0
      %622 = vmatpush1.msra.mxu0 0.0
      %623 = vmatprep.subr.mxu0 0.0
      %624 = vmatpush1.msra.mxu0 0.0
      %625 = vmatprep.subr.mxu0 0.0
      %626 = vmatpush1.msra.mxu0 0.0
      %627 = vmatprep.subr.mxu0 0.0
      %628 = vmatpush1.msra.mxu0 0.0
      %629 = vmatprep.subr.mxu0 0.0
      %630 = vmatpush1.msra.mxu0 0.0
      %631 = vmatprep.subr.mxu0 0.0
      %632 = vmatpush1.msra.mxu0 0.0
      %633 = vmatprep.subr.mxu0 0.0
      %634 = vmatpush1.msra.mxu0 0.0
      %635 = vmatprep.subr.mxu0 0.0
      %636 = vmatpush1.msra.mxu0 0.0
      %637 = vmatprep.subr.mxu0 0.0
      %638 = vmatpush1.msra.mxu0 0.0
      %639 = vmatprep.subr.mxu0 0.0
      %640 = vmatpush1.msra.mxu0 0.0
      %641 = vmatprep.subr.mxu0 0.0
      %642 = vmatpush1.msra.mxu0 0.0
      %643 = vmatprep.subr.mxu0 0.0
      %644 = vmatpush1.msra.mxu0 0.0
      %645 = vmatprep.subr.mxu0 0.0
      %646 = vmatpush1.msra.mxu0 0.0
      %647 = vmatprep.subr.mxu0 0.0
      %648 = vmatpush1.msra.mxu0 0.0
      %649 = vmatprep.subr.mxu0 0.0
      %650 = vmatpush1.msra.mxu0 0.0
      %651 = vmatprep.subr.mxu0 0.0
      %652 = vmatpush1.msra.mxu0 0.0
      %653 = vmatprep.subr.mxu0 0.0
      %654 = vmatpush1.msra.mxu0 0.0
      %655 = vmatprep.subr.mxu0 0.0
      %656 = vmatpush1.msra.mxu0 0.0
      %657 = vmatprep.subr.mxu0 0.0
      %658 = vmatpush1.msra.mxu0 0.0
      %659 = vmatprep.subr.mxu0 0.0
      %660 = vmatpush1.msra.mxu0 0.0
      %661 = vmatprep.subr.mxu0 0.0
      %662 = vmatpush1.msra.mxu0 0.0
      %663 = vmatprep.mubr.f32.mxu0 0.0
      %664 = vmatmul.mubr.f32.gmra.mrb[0].mxu0 %v576
      %v665 = vpop.f32.mrb[0].mxu0
      %v666 = vadd.f32 %v537, %v665
      %v667 = vpop.f32.mrb[0].mxu0
      %668 = vmatprep.mubr.f32.mxu0 0.0
      %669 = vmatmul.mubr.f32.gmra.mrb[0].mxu0 %v579
      %v670 = vpop.f32.mrb[0].mxu0
      %v671 = vadd.f32 %v542, %v670
      %v672 = vpop.f32.mrb[0].mxu0
      %673 = vmatprep.mubr.f32.mxu0 0.0
      %674 = vmatmul.mubr.f32.gmra.mrb[0].mxu0 %v582
      %v675 = vpop.f32.mrb[0].mxu0
      %v676 = vadd.f32 %v547, %v675
      %v677 = vpop.f32.mrb[0].mxu0
      %678 = vmatprep.mubr.f32.mxu0 0.0
      %679 = vmatmul.mubr.f32.gmra.mrb[0].mxu0 %v585
      %v680 = vpop.f32.mrb[0].mxu0
      %v681 = vadd.f32 %v552, %v680
      %v682 = vpop.f32.mrb[0].mxu0
      %683 = vmatprep.mubr.f32.mxu0 0.0
      %684 = vmatmul.mubr.f32.gmra.mrb[0].mxu0 %v588
      %v685 = vpop.f32.mrb[0].mxu0
      %v686 = vadd.f32 %v557, %v685
      %v687 = vpop.f32.mrb[0].mxu0
      %688 = vmatprep.mubr.f32.mxu0 0.0
      %689 = vmatmul.mubr.f32.gmra.mrb[0].mxu0 %v591
      %v690 = vpop.f32.mrb[0].mxu0
      %v691 = vadd.f32 %v562, %v690
      %v692 = vpop.f32.mrb[0].mxu0
      %693 = vmatprep.mubr.f32.mxu0 0.0
      %694 = vmatmul.mubr.f32.gmra.mrb[0].mxu0 %v594
      %v695 = vpop.f32.mrb[0].mxu0
      %v696 = vadd.f32 %v567, %v695
      %v697 = vpop.f32.mrb[0].mxu0
      %698 = vmatprep.mubr.f32.mxu0 0.0
      %699 = vmatmul.mubr.f32.gmra.mrb[0].mxu0 %v597
      %v700 = vpop.f32.mrb[0].mxu0
      %v701 = vadd.f32 %v572, %v700
      %v702 = vpop.f32.mrb[0].mxu0
      %703 = vdwg.mxu0
      %v704 = vadd.f32 %v666, %v58
      %v705 = vadd.f32 %v671, %v63
      %v706 = vadd.f32 %v676, %v68
      %v707 = vadd.f32 %v681, %v73
      %v708 = vadd.f32 %v686, %v78
      %v709 = vadd.f32 %v691, %v83
      %v710 = vadd.f32 %v696, %v88
      %v711 = vadd.f32 %v701, %v93
      %v712 = vxor.u32 %v704, 2147483648
      %v713 = vxor.u32 %v705, 2147483648
      %v714 = vxor.u32 %v706, 2147483648
      %v715 = vxor.u32 %v707, 2147483648
      %v716 = vxor.u32 %v708, 2147483648
      %v717 = vxor.u32 %v709, 2147483648
      %v718 = vmul.f32 %v712, 1.442695
      %v719 = vpow.pop %v718
      %v720 = vmul.f32 %v713, 1.442695
      %v721 = vpow.pop %v720
      %v722 = vmul.f32 %v714, 1.442695
      %v723 = vpow.pop %v722
      %v724 = vmul.f32 %v715, 1.442695
      %v725 = vpow.pop %v724
      %v726 = vmul.f32 %v716, 1.442695
      %v727 = vpow.pop %v726
      %v728 = vmul.f32 %v717, 1.442695
      %v729 = vpow.pop %v728
      %v730 = vadd.f32 %v719, 1.0
      %v731 = vadd.f32 %v721, 1.0
      %v732 = vadd.f32 %v723, 1.0
      %v733 = vadd.f32 %v725, 1.0
      %v734 = vadd.f32 %v727, 1.0
      %v735 = vadd.f32 %v729, 1.0
      %v736 = vrcp.pop %v730
      %v737 = vmul.f32 1.0, %v736
      %v738 = vrcp.pop %v731
      %v739 = vmul.f32 1.0, %v738
      %v740 = vrcp.pop %v732
      %v741 = vmul.f32 1.0, %v740
      %v742 = vrcp.pop %v733
      %v743 = vmul.f32 1.0, %v742
      %v744 = vrcp.pop %v734
      %v745 = vmul.f32 1.0, %v744
      %v746 = vrcp.pop %v735
      %v747 = vmul.f32 1.0, %v746
      %v748 = vtanh.pop %v710
      %v749 = vtanh.pop %v711
      %v750 = vmul.f32 %v741, %v440
      %v751 = vmul.f32 %v743, %v441
      %v752 = vmul.f32 %v737, %v748
      %v753 = vmul.f32 %v739, %v749
      %v754 = vadd.f32 %v750, %v752
      %v755 = vadd.f32 %v751, %v753
      %v756 = vtanh.pop %v754
      %v757 = vtanh.pop %v755
      %v758 = vmul.f32 %v745, %v756
      %v759 = vmul.f32 %v747, %v757
    $region30: #{tpu_custom_call.1} parent=1 // loop_footer
      %s437 = sadd.s32 1, %s433
    $region31: #{tpu_custom_call.1} parent=1 // loop_footer_branch
      %432 = sbr.rel target = $region27
    $region32: #{tpu_custom_call.1} parent=1 // loop_exit
      _
    %s760 = scalar_lea.vmem %s0, 14
    %v761 = vld [vmem:[%s760] sm:$0x3]
    %v762 = vld [vmem:[%s1] sm:$0x3]
    %v763 = vld [vmem:[%s3] sm:$0x3]
    %v764 = vld [vmem:[%s2] sm:$0x3]
    %766 = vset.pattern.permute.xlu0 0
    %767 = vperm.xlu0 %766, %v207
    %v768 = vpop.permute.xlu0 %767
    %771 = vset.pattern.permute.xlu0 0
    %772 = vperm.xlu0 %771, %v208
    %v773 = vpop.permute.xlu0 %772
    %v775 = vlaneseq
    %v776 = vshrl.u32 %v775, 7
    %v777 = vsub.s32 0, %v776
    %v778 = vrot.slane %v764, %v777
    %v779 = vmul.f32 %v768, %v778
    %v780 = vmul.f32 %v773, %v778
    %781 = vset.pattern.permute.xlu0 1
    %782 = vperm.xlu0 %781, %v207
    %v783 = vpop.permute.xlu0 %782
    %785 = vset.pattern.permute.xlu0 1
    %786 = vperm.xlu0 %785, %v208
    %v787 = vpop.permute.xlu0 %786
    %v789 = vlaneseq
    %v790 = vshrl.u32 %v789, 7
    %v791 = vsub.s32 1, %v790
    %v792 = vrot.slane %v764, %v791
    %v793 = vmul.f32 %v783, %v792
    %v794 = vmul.f32 %v787, %v792
    %v795 = vadd.f32 %v779, %v793
    %v796 = vadd.f32 %v780, %v794
    %v797 = vadd.f32 %v795, %v214
    %v798 = vadd.f32 %v796, %v219
    %v799 = vlaneseq
    %v800 = vand.u32 %v799, 127
    %vm801 = vcmp.lt.s32.totalorder %v800, 0
    %v802 = vsub.s32 0, %v800
    %v803 = vsel %vm801, %v802, %v800
    %v804 = vshrl.u32 %v803, 1
    %v805 = vand.u32 %v803, 1
    %v806 = vsub.s32 0, %v805
    %v807 = vsel %vm801, %v806, %v805
    %vm808 = vcmp.ne.s32.totalorder %v807, 0
    %vm809 = vcmp.lt.s32.totalorder %v807, 0
    %vm810 = vmand %vm809, %vm808
    %v811 = vadd.s32 %v807, 2
    %v812 = vsel %vm810, %v811, %v807
    %vm813 = vcmp.eq.s32.totalorder %v812, 0
    %v814 = vsel %vm813, 1, 0
    %v815 = vcvt.s32.f32 %v814
    %vm816 = vcmp.eq.s32.totalorder %v812, 1
    %v817 = vsel %vm816, 1, 0
    %v818 = vcvt.s32.f32 %v817
    loop: start=0, step=1, limit=12
    $region33: #{tpu_custom_call.1} parent=1 // loop_pre_header
      _
    $region34: #{tpu_custom_call.1} parent=1 // loop_header
      %s820 = sphi 0, %s824
      %p821 = scmp.ge.s32.totalorder %s820, 12
      %v825 = vphi %v438, %v1263
      %v826 = vphi %v439, %v1264
      %v827 = vphi 0.0, %v1259
      %v828 = vphi 0.0, %v1260
      %v829 = vphi 0.0, %v1526
      %v830 = vphi 0.0, %v1527
      %v831 = vphi %v761, %v1769
      %v832 = vphi %v762, %v1781
      %v833 = vphi 0.0, %v1780
    $region35: #{tpu_custom_call.1} parent=1 // loop_header_branch
      %823 = sbr.rel (%p821) target = $region39
    $region36: #{tpu_custom_call.1} parent=1 // loop_body
      %835 = vset.pattern.permute.xlu0 0
      %836 = vperm.xlu0 %835, %v97
      %v837 = vpop.permute.xlu0 %836
      %840 = vset.pattern.permute.xlu0 0
      %841 = vperm.xlu0 %840, %v98
      %v842 = vpop.permute.xlu0 %841
      %v844 = vlaneseq
      %v845 = vshrl.u32 %v844, 7
      %v846 = vsub.s32 0, %v845
      %v847 = vrot.slane %v831, %v846
      %v848 = vmul.f32 %v837, %v847
      %v849 = vmul.f32 %v842, %v847
      %v851 = vsel %vm415, %v95, 0
      %v854 = vsel %vm415, %v96, 0
      %856 = vmatprep.subr.mxu0 0.0
      %857 = vmatpush1.msra.mxu0 %v829
      %858 = vmatprep.subr.mxu0 0.0
      %859 = vmatpush1.msra.mxu0 %v830
      %860 = vmatprep.subr.mxu0 0.0
      %861 = vmatpush1.msra.mxu0 0.0
      %862 = vmatprep.subr.mxu0 0.0
      %863 = vmatpush1.msra.mxu0 0.0
      %864 = vmatprep.subr.mxu0 0.0
      %865 = vmatpush1.msra.mxu0 0.0
      %866 = vmatprep.subr.mxu0 0.0
      %867 = vmatpush1.msra.mxu0 0.0
      %868 = vmatprep.subr.mxu0 0.0
      %869 = vmatpush1.msra.mxu0 0.0
      %870 = vmatprep.subr.mxu0 0.0
      %871 = vmatpush1.msra.mxu0 0.0
      %872 = vmatprep.subr.mxu0 0.0
      %873 = vmatpush1.msra.mxu0 0.0
      %874 = vmatprep.subr.mxu0 0.0
      %875 = vmatpush1.msra.mxu0 0.0
      %876 = vmatprep.subr.mxu0 0.0
      %877 = vmatpush1.msra.mxu0 0.0
      %878 = vmatprep.subr.mxu0 0.0
      %879 = vmatpush1.msra.mxu0 0.0
      %880 = vmatprep.subr.mxu0 0.0
      %881 = vmatpush1.msra.mxu0 0.0
      %882 = vmatprep.subr.mxu0 0.0
      %883 = vmatpush1.msra.mxu0 0.0
      %884 = vmatprep.subr.mxu0 0.0
      %885 = vmatpush1.msra.mxu0 0.0
      %886 = vmatprep.subr.mxu0 0.0
      %887 = vmatpush1.msra.mxu0 0.0
      %888 = vmatprep.subr.mxu0 0.0
      %889 = vmatpush1.msra.mxu0 0.0
      %890 = vmatprep.subr.mxu0 0.0
      %891 = vmatpush1.msra.mxu0 0.0
      %892 = vmatprep.subr.mxu0 0.0
      %893 = vmatpush1.msra.mxu0 0.0
      %894 = vmatprep.subr.mxu0 0.0
      %895 = vmatpush1.msra.mxu0 0.0
      %896 = vmatprep.subr.mxu0 0.0
      %897 = vmatpush1.msra.mxu0 0.0
      %898 = vmatprep.subr.mxu0 0.0
      %899 = vmatpush1.msra.mxu0 0.0
      %900 = vmatprep.subr.mxu0 0.0
      %901 = vmatpush1.msra.mxu0 0.0
      %902 = vmatprep.subr.mxu0 0.0
      %903 = vmatpush1.msra.mxu0 0.0
      %904 = vmatprep.subr.mxu0 0.0
      %905 = vmatpush1.msra.mxu0 0.0
      %906 = vmatprep.subr.mxu0 0.0
      %907 = vmatpush1.msra.mxu0 0.0
      %908 = vmatprep.subr.mxu0 0.0
      %909 = vmatpush1.msra.mxu0 0.0
      %910 = vmatprep.subr.mxu0 0.0
      %911 = vmatpush1.msra.mxu0 0.0
      %912 = vmatprep.subr.mxu0 0.0
      %913 = vmatpush1.msra.mxu0 0.0
      %914 = vmatprep.subr.mxu0 0.0
      %915 = vmatpush1.msra.mxu0 0.0
      %916 = vmatprep.subr.mxu0 0.0
      %917 = vmatpush1.msra.mxu0 0.0
      %918 = vmatprep.subr.mxu0 0.0
      %919 = vmatpush1.msra.mxu0 0.0
      %920 = vmatprep.mubr.f32.mxu0 0.0
      %921 = vmatmul.mubr.f32.gmra.mrb[0].mxu0 %v851
      %v922 = vpop.f32.mrb[0].mxu0
      %v923 = vadd.f32 %v848, %v922
      %v924 = vpop.f32.mrb[0].mxu0
      %925 = vmatprep.mubr.f32.mxu0 0.0
      %926 = vmatmul.mubr.f32.gmra.mrb[0].mxu0 %v854
      %v927 = vpop.f32.mrb[0].mxu0
      %v928 = vadd.f32 %v849, %v927
      %v929 = vpop.f32.mrb[0].mxu0
      %930 = vdwg.mxu0
      %931 = vset.pattern.permute.xlu0 1
      %932 = vperm.xlu0 %931, %v97
      %v933 = vpop.permute.xlu0 %932
      %935 = vset.pattern.permute.xlu0 1
      %936 = vperm.xlu0 %935, %v98
      %v937 = vpop.permute.xlu0 %936
      %v939 = vlaneseq
      %v940 = vshrl.u32 %v939, 7
      %v941 = vsub.s32 1, %v940
      %v942 = vrot.slane %v831, %v941
      %v943 = vmul.f32 %v933, %v942
      %v944 = vmul.f32 %v937, %v942
      %v945 = vadd.f32 %v923, %v943
      %v946 = vadd.f32 %v928, %v944
      %v947 = vadd.f32 %v945, %v104
      %v948 = vadd.f32 %v946, %v109
      %v949 = vmax.f32 %v947, 0.0
      %v950 = vmax.f32 %v948, 0.0
      %v952 = vsel %vm415, %v119, 0
      %v955 = vsel %vm415, %v120, 0
      %v958 = vsel %vm415, %v121, 0
      %v961 = vsel %vm415, %v122, 0
      %v964 = vsel %vm415, %v123, 0
      %v967 = vsel %vm415, %v124, 0
      %v970 = vsel %vm415, %v125, 0
      %v973 = vsel %vm415, %v126, 0
      %975 = vmatprep.subr.mxu0 0.0
      %976 = vmatpush1.msra.mxu0 %v825
      %977 = vmatprep.subr.mxu0 0.0
      %978 = vmatpush1.msra.mxu0 %v826
      %979 = vmatprep.subr.mxu0 0.0
      %980 = vmatpush1.msra.mxu0 0.0
      %981 = vmatprep.subr.mxu0 0.0
      %982 = vmatpush1.msra.mxu0 0.0
      %983 = vmatprep.subr.mxu0 0.0
      %984 = vmatpush1.msra.mxu0 0.0
      %985 = vmatprep.subr.mxu0 0.0
      %986 = vmatpush1.msra.mxu0 0.0
      %987 = vmatprep.subr.mxu0 0.0
      %988 = vmatpush1.msra.mxu0 0.0
      %989 = vmatprep.subr.mxu0 0.0
      %990 = vmatpush1.msra.mxu0 0.0
      %991 = vmatprep.subr.mxu0 0.0
      %992 = vmatpush1.msra.mxu0 0.0
      %993 = vmatprep.subr.mxu0 0.0
      %994 = vmatpush1.msra.mxu0 0.0
      %995 = vmatprep.subr.mxu0 0.0
      %996 = vmatpush1.msra.mxu0 0.0
      %997 = vmatprep.subr.mxu0 0.0
      %998 = vmatpush1.msra.mxu0 0.0
      %999 = vmatprep.subr.mxu0 0.0
      %1000 = vmatpush1.msra.mxu0 0.0
      %1001 = vmatprep.subr.mxu0 0.0
      %1002 = vmatpush1.msra.mxu0 0.0
      %1003 = vmatprep.subr.mxu0 0.0
      %1004 = vmatpush1.msra.mxu0 0.0
      %1005 = vmatprep.subr.mxu0 0.0
      %1006 = vmatpush1.msra.mxu0 0.0
      %1007 = vmatprep.subr.mxu0 0.0
      %1008 = vmatpush1.msra.mxu0 0.0
      %1009 = vmatprep.subr.mxu0 0.0
      %1010 = vmatpush1.msra.mxu0 0.0
      %1011 = vmatprep.subr.mxu0 0.0
      %1012 = vmatpush1.msra.mxu0 0.0
      %1013 = vmatprep.subr.mxu0 0.0
      %1014 = vmatpush1.msra.mxu0 0.0
      %1015 = vmatprep.subr.mxu0 0.0
      %1016 = vmatpush1.msra.mxu0 0.0
      %1017 = vmatprep.subr.mxu0 0.0
      %1018 = vmatpush1.msra.mxu0 0.0
      %1019 = vmatprep.subr.mxu0 0.0
      %1020 = vmatpush1.msra.mxu0 0.0
      %1021 = vmatprep.subr.mxu0 0.0
      %1022 = vmatpush1.msra.mxu0 0.0
      %1023 = vmatprep.subr.mxu0 0.0
      %1024 = vmatpush1.msra.mxu0 0.0
      %1025 = vmatprep.subr.mxu0 0.0
      %1026 = vmatpush1.msra.mxu0 0.0
      %1027 = vmatprep.subr.mxu0 0.0
      %1028 = vmatpush1.msra.mxu0 0.0
      %1029 = vmatprep.subr.mxu0 0.0
      %1030 = vmatpush1.msra.mxu0 0.0
      %1031 = vmatprep.subr.mxu0 0.0
      %1032 = vmatpush1.msra.mxu0 0.0
      %1033 = vmatprep.subr.mxu0 0.0
      %1034 = vmatpush1.msra.mxu0 0.0
      %1035 = vmatprep.subr.mxu0 0.0
      %1036 = vmatpush1.msra.mxu0 0.0
      %1037 = vmatprep.subr.mxu0 0.0
      %1038 = vmatpush1.msra.mxu0 0.0
      %1039 = vmatprep.mubr.f32.mxu0 0.0
      %1040 = vmatmul.mubr.f32.gmra.mrb[0].mxu0 %v952
      %v1041 = vpop.f32.mrb[0].mxu0
      %v1042 = vadd.f32 0.0, %v1041
      %v1043 = vpop.f32.mrb[0].mxu0
      %1044 = vmatprep.mubr.f32.mxu0 0.0
      %1045 = vmatmul.mubr.f32.gmra.mrb[0].mxu0 %v955
      %v1046 = vpop.f32.mrb[0].mxu0
      %v1047 = vadd.f32 0.0, %v1046
      %v1048 = vpop.f32.mrb[0].mxu0
      %1049 = vmatprep.mubr.f32.mxu0 0.0
      %1050 = vmatmul.mubr.f32.gmra.mrb[0].mxu0 %v958
      %v1051 = vpop.f32.mrb[0].mxu0
      %v1052 = vadd.f32 0.0, %v1051
      %v1053 = vpop.f32.mrb[0].mxu0
      %1054 = vmatprep.mubr.f32.mxu0 0.0
      %1055 = vmatmul.mubr.f32.gmra.mrb[0].mxu0 %v961
      %v1056 = vpop.f32.mrb[0].mxu0
      %v1057 = vadd.f32 0.0, %v1056
      %v1058 = vpop.f32.mrb[0].mxu0
      %1059 = vmatprep.mubr.f32.mxu0 0.0
      %1060 = vmatmul.mubr.f32.gmra.mrb[0].mxu0 %v964
      %v1061 = vpop.f32.mrb[0].mxu0
      %v1062 = vadd.f32 0.0, %v1061
      %v1063 = vpop.f32.mrb[0].mxu0
      %1064 = vmatprep.mubr.f32.mxu0 0.0
      %1065 = vmatmul.mubr.f32.gmra.mrb[0].mxu0 %v967
      %v1066 = vpop.f32.mrb[0].mxu0
      %v1067 = vadd.f32 0.0, %v1066
      %v1068 = vpop.f32.mrb[0].mxu0
      %1069 = vmatprep.mubr.f32.mxu0 0.0
      %1070 = vmatmul.mubr.f32.gmra.mrb[0].mxu0 %v970
      %v1071 = vpop.f32.mrb[0].mxu0
      %v1072 = vadd.f32 0.0, %v1071
      %v1073 = vpop.f32.mrb[0].mxu0
      %1074 = vmatprep.mubr.f32.mxu0 0.0
      %1075 = vmatmul.mubr.f32.gmra.mrb[0].mxu0 %v973
      %v1076 = vpop.f32.mrb[0].mxu0
      %v1077 = vadd.f32 0.0, %v1076
      %v1078 = vpop.f32.mrb[0].mxu0
      %1079 = vdwg.mxu0
      %v1081 = vsel %vm415, %v111, 0
      %v1084 = vsel %vm415, %v112, 0
      %v1087 = vsel %vm415, %v113, 0
      %v1090 = vsel %vm415, %v114, 0
      %v1093 = vsel %vm415, %v115, 0
      %v1096 = vsel %vm415, %v116, 0
      %v1099 = vsel %vm415, %v117, 0
      %v1102 = vsel %vm415, %v118, 0
      %1104 = vmatprep.subr.mxu0 0.0
      %1105 = vmatpush1.msra.mxu0 %v949
      %1106 = vmatprep.subr.mxu0 0.0
      %1107 = vmatpush1.msra.mxu0 %v950
      %1108 = vmatprep.subr.mxu0 0.0
      %1109 = vmatpush1.msra.mxu0 0.0
      %1110 = vmatprep.subr.mxu0 0.0
      %1111 = vmatpush1.msra.mxu0 0.0
      %1112 = vmatprep.subr.mxu0 0.0
      %1113 = vmatpush1.msra.mxu0 0.0
      %1114 = vmatprep.subr.mxu0 0.0
      %1115 = vmatpush1.msra.mxu0 0.0
      %1116 = vmatprep.subr.mxu0 0.0
      %1117 = vmatpush1.msra.mxu0 0.0
      %1118 = vmatprep.subr.mxu0 0.0
      %1119 = vmatpush1.msra.mxu0 0.0
      %1120 = vmatprep.subr.mxu0 0.0
      %1121 = vmatpush1.msra.mxu0 0.0
      %1122 = vmatprep.subr.mxu0 0.0
      %1123 = vmatpush1.msra.mxu0 0.0
      %1124 = vmatprep.subr.mxu0 0.0
      %1125 = vmatpush1.msra.mxu0 0.0
      %1126 = vmatprep.subr.mxu0 0.0
      %1127 = vmatpush1.msra.mxu0 0.0
      %1128 = vmatprep.subr.mxu0 0.0
      %1129 = vmatpush1.msra.mxu0 0.0
      %1130 = vmatprep.subr.mxu0 0.0
      %1131 = vmatpush1.msra.mxu0 0.0
      %1132 = vmatprep.subr.mxu0 0.0
      %1133 = vmatpush1.msra.mxu0 0.0
      %1134 = vmatprep.subr.mxu0 0.0
      %1135 = vmatpush1.msra.mxu0 0.0
      %1136 = vmatprep.subr.mxu0 0.0
      %1137 = vmatpush1.msra.mxu0 0.0
      %1138 = vmatprep.subr.mxu0 0.0
      %1139 = vmatpush1.msra.mxu0 0.0
      %1140 = vmatprep.subr.mxu0 0.0
      %1141 = vmatpush1.msra.mxu0 0.0
      %1142 = vmatprep.subr.mxu0 0.0
      %1143 = vmatpush1.msra.mxu0 0.0
      %1144 = vmatprep.subr.mxu0 0.0
      %1145 = vmatpush1.msra.mxu0 0.0
      %1146 = vmatprep.subr.mxu0 0.0
      %1147 = vmatpush1.msra.mxu0 0.0
      %1148 = vmatprep.subr.mxu0 0.0
      %1149 = vmatpush1.msra.mxu0 0.0
      %1150 = vmatprep.subr.mxu0 0.0
      %1151 = vmatpush1.msra.mxu0 0.0
      %1152 = vmatprep.subr.mxu0 0.0
      %1153 = vmatpush1.msra.mxu0 0.0
      %1154 = vmatprep.subr.mxu0 0.0
      %1155 = vmatpush1.msra.mxu0 0.0
      %1156 = vmatprep.subr.mxu0 0.0
      %1157 = vmatpush1.msra.mxu0 0.0
      %1158 = vmatprep.subr.mxu0 0.0
      %1159 = vmatpush1.msra.mxu0 0.0
      %1160 = vmatprep.subr.mxu0 0.0
      %1161 = vmatpush1.msra.mxu0 0.0
      %1162 = vmatprep.subr.mxu0 0.0
      %1163 = vmatpush1.msra.mxu0 0.0
      %1164 = vmatprep.subr.mxu0 0.0
      %1165 = vmatpush1.msra.mxu0 0.0
      %1166 = vmatprep.subr.mxu0 0.0
      %1167 = vmatpush1.msra.mxu0 0.0
      %1168 = vmatprep.mubr.f32.mxu0 0.0
      %1169 = vmatmul.mubr.f32.gmra.mrb[0].mxu0 %v1081
      %v1170 = vpop.f32.mrb[0].mxu0
      %v1171 = vadd.f32 %v1042, %v1170
      %v1172 = vpop.f32.mrb[0].mxu0
      %1173 = vmatprep.mubr.f32.mxu0 0.0
      %1174 = vmatmul.mubr.f32.gmra.mrb[0].mxu0 %v1084
      %v1175 = vpop.f32.mrb[0].mxu0
      %v1176 = vadd.f32 %v1047, %v1175
      %v1177 = vpop.f32.mrb[0].mxu0
      %1178 = vmatprep.mubr.f32.mxu0 0.0
      %1179 = vmatmul.mubr.f32.gmra.mrb[0].mxu0 %v1087
      %v1180 = vpop.f32.mrb[0].mxu0
      %v1181 = vadd.f32 %v1052, %v1180
      %v1182 = vpop.f32.mrb[0].mxu0
      %1183 = vmatprep.mubr.f32.mxu0 0.0
      %1184 = vmatmul.mubr.f32.gmra.mrb[0].mxu0 %v1090
      %v1185 = vpop.f32.mrb[0].mxu0
      %v1186 = vadd.f32 %v1057, %v1185
      %v1187 = vpop.f32.mrb[0].mxu0
      %1188 = vmatprep.mubr.f32.mxu0 0.0
      %1189 = vmatmul.mubr.f32.gmra.mrb[0].mxu0 %v1093
      %v1190 = vpop.f32.mrb[0].mxu0
      %v1191 = vadd.f32 %v1062, %v1190
      %v1192 = vpop.f32.mrb[0].mxu0
      %1193 = vmatprep.mubr.f32.mxu0 0.0
      %1194 = vmatmul.mubr.f32.gmra.mrb[0].mxu0 %v1096
      %v1195 = vpop.f32.mrb[0].mxu0
      %v1196 = vadd.f32 %v1067, %v1195
      %v1197 = vpop.f32.mrb[0].mxu0
      %1198 = vmatprep.mubr.f32.mxu0 0.0
      %1199 = vmatmul.mubr.f32.gmra.mrb[0].mxu0 %v1099
      %v1200 = vpop.f32.mrb[0].mxu0
      %v1201 = vadd.f32 %v1072, %v1200
      %v1202 = vpop.f32.mrb[0].mxu0
      %1203 = vmatprep.mubr.f32.mxu0 0.0
      %1204 = vmatmul.mubr.f32.gmra.mrb[0].mxu0 %v1102
      %v1205 = vpop.f32.mrb[0].mxu0
      %v1206 = vadd.f32 %v1077, %v1205
      %v1207 = vpop.f32.mrb[0].mxu0
      %1208 = vdwg.mxu0
      %v1209 = vadd.f32 %v1171, %v138
      %v1210 = vadd.f32 %v1176, %v143
      %v1211 = vadd.f32 %v1181, %v148
      %v1212 = vadd.f32 %v1186, %v153
      %v1213 = vadd.f32 %v1191, %v158
      %v1214 = vadd.f32 %v1196, %v163
      %v1215 = vadd.f32 %v1201, %v168
      %v1216 = vadd.f32 %v1206, %v173
      %v1217 = vxor.u32 %v1209, 2147483648
      %v1218 = vxor.u32 %v1210, 2147483648
      %v1219 = vxor.u32 %v1211, 2147483648
      %v1220 = vxor.u32 %v1212, 2147483648
      %v1221 = vxor.u32 %v1213, 2147483648
      %v1222 = vxor.u32 %v1214, 2147483648
      %v1223 = vmul.f32 %v1217, 1.442695
      %v1224 = vpow.pop %v1223
      %v1225 = vmul.f32 %v1218, 1.442695
      %v1226 = vpow.pop %v1225
      %v1227 = vmul.f32 %v1219, 1.442695
      %v1228 = vpow.pop %v1227
      %v1229 = vmul.f32 %v1220, 1.442695
      %v1230 = vpow.pop %v1229
      %v1231 = vmul.f32 %v1221, 1.442695
      %v1232 = vpow.pop %v1231
      %v1233 = vmul.f32 %v1222, 1.442695
      %v1234 = vpow.pop %v1233
      %v1235 = vadd.f32 %v1224, 1.0
      %v1236 = vadd.f32 %v1226, 1.0
      %v1237 = vadd.f32 %v1228, 1.0
      %v1238 = vadd.f32 %v1230, 1.0
      %v1239 = vadd.f32 %v1232, 1.0
      %v1240 = vadd.f32 %v1234, 1.0
      %v1241 = vrcp.pop %v1235
      %v1242 = vmul.f32 1.0, %v1241
      %v1243 = vrcp.pop %v1236
      %v1244 = vmul.f32 1.0, %v1243
      %v1245 = vrcp.pop %v1237
      %v1246 = vmul.f32 1.0, %v1245
      %v1247 = vrcp.pop %v1238
      %v1248 = vmul.f32 1.0, %v1247
      %v1249 = vrcp.pop %v1239
      %v1250 = vmul.f32 1.0, %v1249
      %v1251 = vrcp.pop %v1240
      %v1252 = vmul.f32 1.0, %v1251
      %v1253 = vtanh.pop %v1215
      %v1254 = vtanh.pop %v1216
      %v1255 = vmul.f32 %v1246, %v827
      %v1256 = vmul.f32 %v1248, %v828
      %v1257 = vmul.f32 %v1242, %v1253
      %v1258 = vmul.f32 %v1244, %v1254
      %v1259 = vadd.f32 %v1255, %v1257
      %v1260 = vadd.f32 %v1256, %v1258
      %v1261 = vtanh.pop %v1259
      %v1262 = vtanh.pop %v1260
      %v1263 = vmul.f32 %v1250, %v1261
      %v1264 = vmul.f32 %v1252, %v1262
      %1266 = vrot.lane.b32.xlu0 %v832, 127
      %v1267 = vpop.permute.xlu0 %1266
      %1269 = vrot.lane.b32.xlu0 %v832, 15
      %v1270 = vpop.permute.xlu0 %1269
      %vm1272 = vcmask 121856
      %v1273 = vsel %vm1272, %v1267, %v1270
      %1274 = vrot.lane.b32.xlu0 %v832, 113
      %v1275 = vpop.permute.xlu0 %1274
      %1277 = vrot.lane.b32.xlu0 %v832, 1
      %v1278 = vpop.permute.xlu0 %1277
      %vm1280 = vcmask 7168
      %v1281 = vsel %vm1280, %v1275, %v1278
      %v1282 = vmul.f32 %v815, %v832
      %v1283 = vadd.f32 %v1282, 0.0
      %v1284 = vmul.f32 %v818, %v1281
      %v1285 = vadd.f32 %v1283, %v1284
      %v1286 = vsub.f32 %v832, %v1285
      %1288 = vset.pattern.permute.xlu0 0
      %1289 = vperm.xlu0 %1288, %v175
      %v1290 = vpop.permute.xlu0 %1289
      %1293 = vset.pattern.permute.xlu0 0
      %1294 = vperm.xlu0 %1293, %v176
      %v1295 = vpop.permute.xlu0 %1294
      %v1297 = vlaneseq
      %v1298 = vshrl.u32 %v1297, 7
      %v1299 = vsub.s32 0, %v1298
      %v1300 = vrot.slane %v1286, %v1299
      %v1301 = vmul.f32 %v1290, %v1300
      %v1302 = vmul.f32 %v1295, %v1300
      %1303 = vset.pattern.permute.xlu0 1
      %1304 = vperm.xlu0 %1303, %v175
      %v1305 = vpop.permute.xlu0 %1304
      %1307 = vset.pattern.permute.xlu0 1
      %1308 = vperm.xlu0 %1307, %v176
      %v1309 = vpop.permute.xlu0 %1308
      %v1311 = vlaneseq
      %v1312 = vshrl.u32 %v1311, 7
      %v1313 = vsub.s32 1, %v1312
      %v1314 = vrot.slane %v1286, %v1313
      %v1315 = vmul.f32 %v1305, %v1314
      %v1316 = vmul.f32 %v1309, %v1314
      %v1317 = vadd.f32 %v1301, %v1315
      %v1318 = vadd.f32 %v1302, %v1316
      %v1319 = vadd.f32 %v1317, %v182
      %v1320 = vadd.f32 %v1318, %v187
      %v1321 = vmax.f32 %v1319, 0.0
      %v1322 = vmax.f32 %v1320, 0.0
      %v1323 = vlaneseq
      %v1324 = vshrl.u32 %v1323, 7
      %v1325 = vsub.s32 0, %v1324
      %v1326 = vrot.slane %v763, %v1325
      %v1327 = vmul.f32 %v1326, %v1321
      %v1328 = vmul.f32 %v1326, %v1322
      %v1329 = vadd.f32 %v1327, 0.0
      %v1330 = vadd.f32 %v1328, 0.0
      %v1331 = vmul.f32 %v815, %v1273
      %v1332 = vadd.f32 %v1331, 0.0
      %v1333 = vmul.f32 %v818, %v832
      %v1334 = vadd.f32 %v1332, %v1333
      %v1335 = vsub.f32 %v832, %v1334
      %v1336 = vlaneseq
      %v1337 = vshrl.u32 %v1336, 7
      %v1338 = vsub.s32 0, %v1337
      %v1339 = vrot.slane %v1335, %v1338
      %v1340 = vmul.f32 %v1290, %v1339
      %v1341 = vmul.f32 %v1295, %v1339
      %v1342 = vlaneseq
      %v1343 = vshrl.u32 %v1342, 7
      %v1344 = vsub.s32 1, %v1343
      %v1345 = vrot.slane %v1335, %v1344
      %v1346 = vmul.f32 %v1305, %v1345
      %v1347 = vmul.f32 %v1309, %v1345
      %v1348 = vadd.f32 %v1340, %v1346
      %v1349 = vadd.f32 %v1341, %v1347
      %v1350 = vadd.f32 %v1348, %v182
      %v1351 = vadd.f32 %v1349, %v187
      %v1352 = vmax.f32 %v1350, 0.0
      %v1353 = vmax.f32 %v1351, 0.0
      %v1354 = vlaneseq
      %v1355 = vshrl.u32 %v1354, 7
      %v1356 = vsub.s32 1, %v1355
      %v1357 = vrot.slane %v763, %v1356
      %v1358 = vmul.f32 %v1357, %v1352
      %v1359 = vmul.f32 %v1357, %v1353
      %v1360 = vadd.f32 %v1329, %v1358
      %v1361 = vadd.f32 %v1330, %v1359
      %v1363 = vsel %vm415, %v191, 0
      %v1366 = vsel %vm415, %v192, 0
      %1368 = vmatprep.subr.mxu0 0.0
      %1369 = vmatpush1.msra.mxu0 %v1263
      %1370 = vmatprep.subr.mxu0 0.0
      %1371 = vmatpush1.msra.mxu0 %v1264
      %1372 = vmatprep.subr.mxu0 0.0
      %1373 = vmatpush1.msra.mxu0 0.0
      %1374 = vmatprep.subr.mxu0 0.0
      %1375 = vmatpush1.msra.mxu0 0.0
      %1376 = vmatprep.subr.mxu0 0.0
      %1377 = vmatpush1.msra.mxu0 0.0
      %1378 = vmatprep.subr.mxu0 0.0
      %1379 = vmatpush1.msra.mxu0 0.0
      %1380 = vmatprep.subr.mxu0 0.0
      %1381 = vmatpush1.msra.mxu0 0.0
      %1382 = vmatprep.subr.mxu0 0.0
      %1383 = vmatpush1.msra.mxu0 0.0
      %1384 = vmatprep.subr.mxu0 0.0
      %1385 = vmatpush1.msra.mxu0 0.0
      %1386 = vmatprep.subr.mxu0 0.0
      %1387 = vmatpush1.msra.mxu0 0.0
      %1388 = vmatprep.subr.mxu0 0.0
      %1389 = vmatpush1.msra.mxu0 0.0
      %1390 = vmatprep.subr.mxu0 0.0
      %1391 = vmatpush1.msra.mxu0 0.0
      %1392 = vmatprep.subr.mxu0 0.0
      %1393 = vmatpush1.msra.mxu0 0.0
      %1394 = vmatprep.subr.mxu0 0.0
      %1395 = vmatpush1.msra.mxu0 0.0
      %1396 = vmatprep.subr.mxu0 0.0
      %1397 = vmatpush1.msra.mxu0 0.0
      %1398 = vmatprep.subr.mxu0 0.0
      %1399 = vmatpush1.msra.mxu0 0.0
      %1400 = vmatprep.subr.mxu0 0.0
      %1401 = vmatpush1.msra.mxu0 0.0
      %1402 = vmatprep.subr.mxu0 0.0
      %1403 = vmatpush1.msra.mxu0 0.0
      %1404 = vmatprep.subr.mxu0 0.0
      %1405 = vmatpush1.msra.mxu0 0.0
      %1406 = vmatprep.subr.mxu0 0.0
      %1407 = vmatpush1.msra.mxu0 0.0
      %1408 = vmatprep.subr.mxu0 0.0
      %1409 = vmatpush1.msra.mxu0 0.0
      %1410 = vmatprep.subr.mxu0 0.0
      %1411 = vmatpush1.msra.mxu0 0.0
      %1412 = vmatprep.subr.mxu0 0.0
      %1413 = vmatpush1.msra.mxu0 0.0
      %1414 = vmatprep.subr.mxu0 0.0
      %1415 = vmatpush1.msra.mxu0 0.0
      %1416 = vmatprep.subr.mxu0 0.0
      %1417 = vmatpush1.msra.mxu0 0.0
      %1418 = vmatprep.subr.mxu0 0.0
      %1419 = vmatpush1.msra.mxu0 0.0
      %1420 = vmatprep.subr.mxu0 0.0
      %1421 = vmatpush1.msra.mxu0 0.0
      %1422 = vmatprep.subr.mxu0 0.0
      %1423 = vmatpush1.msra.mxu0 0.0
      %1424 = vmatprep.subr.mxu0 0.0
      %1425 = vmatpush1.msra.mxu0 0.0
      %1426 = vmatprep.subr.mxu0 0.0
      %1427 = vmatpush1.msra.mxu0 0.0
      %1428 = vmatprep.subr.mxu0 0.0
      %1429 = vmatpush1.msra.mxu0 0.0
      %1430 = vmatprep.subr.mxu0 0.0
      %1431 = vmatpush1.msra.mxu0 0.0
      %1432 = vmatprep.mubr.f32.mxu0 0.0
      %1433 = vmatmul.mubr.f32.gmra.mrb[0].mxu0 %v1363
      %v1434 = vpop.f32.mrb[0].mxu0
      %v1435 = vadd.f32 0.0, %v1434
      %v1436 = vpop.f32.mrb[0].mxu0
      %1437 = vmatprep.mubr.f32.mxu0 0.0
      %1438 = vmatmul.mubr.f32.gmra.mrb[0].mxu0 %v1366
      %v1439 = vpop.f32.mrb[0].mxu0
      %v1440 = vadd.f32 0.0, %v1439
      %v1441 = vpop.f32.mrb[0].mxu0
      %1442 = vdwg.mxu0
      %v1444 = vsel %vm415, %v189, 0
      %v1447 = vsel %vm415, %v190, 0
      %1449 = vmatprep.subr.mxu0 0.0
      %1450 = vmatpush1.msra.mxu0 %v1360
      %1451 = vmatprep.subr.mxu0 0.0
      %1452 = vmatpush1.msra.mxu0 %v1361
      %1453 = vmatprep.subr.mxu0 0.0
      %1454 = vmatpush1.msra.mxu0 0.0
      %1455 = vmatprep.subr.mxu0 0.0
      %1456 = vmatpush1.msra.mxu0 0.0
      %1457 = vmatprep.subr.mxu0 0.0
      %1458 = vmatpush1.msra.mxu0 0.0
      %1459 = vmatprep.subr.mxu0 0.0
      %1460 = vmatpush1.msra.mxu0 0.0
      %1461 = vmatprep.subr.mxu0 0.0
      %1462 = vmatpush1.msra.mxu0 0.0
      %1463 = vmatprep.subr.mxu0 0.0
      %1464 = vmatpush1.msra.mxu0 0.0
      %1465 = vmatprep.subr.mxu0 0.0
      %1466 = vmatpush1.msra.mxu0 0.0
      %1467 = vmatprep.subr.mxu0 0.0
      %1468 = vmatpush1.msra.mxu0 0.0
      %1469 = vmatprep.subr.mxu0 0.0
      %1470 = vmatpush1.msra.mxu0 0.0
      %1471 = vmatprep.subr.mxu0 0.0
      %1472 = vmatpush1.msra.mxu0 0.0
      %1473 = vmatprep.subr.mxu0 0.0
      %1474 = vmatpush1.msra.mxu0 0.0
      %1475 = vmatprep.subr.mxu0 0.0
      %1476 = vmatpush1.msra.mxu0 0.0
      %1477 = vmatprep.subr.mxu0 0.0
      %1478 = vmatpush1.msra.mxu0 0.0
      %1479 = vmatprep.subr.mxu0 0.0
      %1480 = vmatpush1.msra.mxu0 0.0
      %1481 = vmatprep.subr.mxu0 0.0
      %1482 = vmatpush1.msra.mxu0 0.0
      %1483 = vmatprep.subr.mxu0 0.0
      %1484 = vmatpush1.msra.mxu0 0.0
      %1485 = vmatprep.subr.mxu0 0.0
      %1486 = vmatpush1.msra.mxu0 0.0
      %1487 = vmatprep.subr.mxu0 0.0
      %1488 = vmatpush1.msra.mxu0 0.0
      %1489 = vmatprep.subr.mxu0 0.0
      %1490 = vmatpush1.msra.mxu0 0.0
      %1491 = vmatprep.subr.mxu0 0.0
      %1492 = vmatpush1.msra.mxu0 0.0
      %1493 = vmatprep.subr.mxu0 0.0
      %1494 = vmatpush1.msra.mxu0 0.0
      %1495 = vmatprep.subr.mxu0 0.0
      %1496 = vmatpush1.msra.mxu0 0.0
      %1497 = vmatprep.subr.mxu0 0.0
      %1498 = vmatpush1.msra.mxu0 0.0
      %1499 = vmatprep.subr.mxu0 0.0
      %1500 = vmatpush1.msra.mxu0 0.0
      %1501 = vmatprep.subr.mxu0 0.0
      %1502 = vmatpush1.msra.mxu0 0.0
      %1503 = vmatprep.subr.mxu0 0.0
      %1504 = vmatpush1.msra.mxu0 0.0
      %1505 = vmatprep.subr.mxu0 0.0
      %1506 = vmatpush1.msra.mxu0 0.0
      %1507 = vmatprep.subr.mxu0 0.0
      %1508 = vmatpush1.msra.mxu0 0.0
      %1509 = vmatprep.subr.mxu0 0.0
      %1510 = vmatpush1.msra.mxu0 0.0
      %1511 = vmatprep.subr.mxu0 0.0
      %1512 = vmatpush1.msra.mxu0 0.0
      %1513 = vmatprep.mubr.f32.mxu0 0.0
      %1514 = vmatmul.mubr.f32.gmra.mrb[0].mxu0 %v1444
      %v1515 = vpop.f32.mrb[0].mxu0
      %v1516 = vadd.f32 %v1435, %v1515
      %v1517 = vpop.f32.mrb[0].mxu0
      %1518 = vmatprep.mubr.f32.mxu0 0.0
      %1519 = vmatmul.mubr.f32.gmra.mrb[0].mxu0 %v1447
      %v1520 = vpop.f32.mrb[0].mxu0
      %v1521 = vadd.f32 %v1440, %v1520
      %v1522 = vpop.f32.mrb[0].mxu0
      %1523 = vdwg.mxu0
      %v1524 = vadd.f32 %v1516, %v198
      %v1525 = vadd.f32 %v1521, %v203
      %v1526 = vmax.f32 %v1524, 0.0
      %v1527 = vmax.f32 %v1525, 0.0
      %v1528 = vadd.f32 %v1263, %v1526
      %v1529 = vadd.f32 %v1264, %v1527
      %v1531 = vsel %vm415, %v205, 0
      %v1534 = vsel %vm415, %v206, 0
      %1536 = vmatprep.subr.mxu0 0.0
      %1537 = vmatpush1.msra.mxu0 %v1528
      %1538 = vmatprep.subr.mxu0 0.0
      %1539 = vmatpush1.msra.mxu0 %v1529
      %1540 = vmatprep.subr.mxu0 0.0
      %1541 = vmatpush1.msra.mxu0 0.0
      %1542 = vmatprep.subr.mxu0 0.0
      %1543 = vmatpush1.msra.mxu0 0.0
      %1544 = vmatprep.subr.mxu0 0.0
      %1545 = vmatpush1.msra.mxu0 0.0
      %1546 = vmatprep.subr.mxu0 0.0
      %1547 = vmatpush1.msra.mxu0 0.0
      %1548 = vmatprep.subr.mxu0 0.0
      %1549 = vmatpush1.msra.mxu0 0.0
      %1550 = vmatprep.subr.mxu0 0.0
      %1551 = vmatpush1.msra.mxu0 0.0
      %1552 = vmatprep.subr.mxu0 0.0
      %1553 = vmatpush1.msra.mxu0 0.0
      %1554 = vmatprep.subr.mxu0 0.0
      %1555 = vmatpush1.msra.mxu0 0.0
      %1556 = vmatprep.subr.mxu0 0.0
      %1557 = vmatpush1.msra.mxu0 0.0
      %1558 = vmatprep.subr.mxu0 0.0
      %1559 = vmatpush1.msra.mxu0 0.0
      %1560 = vmatprep.subr.mxu0 0.0
      %1561 = vmatpush1.msra.mxu0 0.0
      %1562 = vmatprep.subr.mxu0 0.0
      %1563 = vmatpush1.msra.mxu0 0.0
      %1564 = vmatprep.subr.mxu0 0.0
      %1565 = vmatpush1.msra.mxu0 0.0
      %1566 = vmatprep.subr.mxu0 0.0
      %1567 = vmatpush1.msra.mxu0 0.0
      %1568 = vmatprep.subr.mxu0 0.0
      %1569 = vmatpush1.msra.mxu0 0.0
      %1570 = vmatprep.subr.mxu0 0.0
      %1571 = vmatpush1.msra.mxu0 0.0
      %1572 = vmatprep.subr.mxu0 0.0
      %1573 = vmatpush1.msra.mxu0 0.0
      %1574 = vmatprep.subr.mxu0 0.0
      %1575 = vmatpush1.msra.mxu0 0.0
      %1576 = vmatprep.subr.mxu0 0.0
      %1577 = vmatpush1.msra.mxu0 0.0
      %1578 = vmatprep.subr.mxu0 0.0
      %1579 = vmatpush1.msra.mxu0 0.0
      %1580 = vmatprep.subr.mxu0 0.0
      %1581 = vmatpush1.msra.mxu0 0.0
      %1582 = vmatprep.subr.mxu0 0.0
      %1583 = vmatpush1.msra.mxu0 0.0
      %1584 = vmatprep.subr.mxu0 0.0
      %1585 = vmatpush1.msra.mxu0 0.0
      %1586 = vmatprep.subr.mxu0 0.0
      %1587 = vmatpush1.msra.mxu0 0.0
      %1588 = vmatprep.subr.mxu0 0.0
      %1589 = vmatpush1.msra.mxu0 0.0
      %1590 = vmatprep.subr.mxu0 0.0
      %1591 = vmatpush1.msra.mxu0 0.0
      %1592 = vmatprep.subr.mxu0 0.0
      %1593 = vmatpush1.msra.mxu0 0.0
      %1594 = vmatprep.subr.mxu0 0.0
      %1595 = vmatpush1.msra.mxu0 0.0
      %1596 = vmatprep.subr.mxu0 0.0
      %1597 = vmatpush1.msra.mxu0 0.0
      %1598 = vmatprep.subr.mxu0 0.0
      %1599 = vmatpush1.msra.mxu0 0.0
      %1600 = vmatprep.mubr.f32.mxu0 0.0
      %1601 = vmatmul.mubr.f32.gmra.mrb[0].mxu0 %v1531
      %v1602 = vpop.f32.mrb[0].mxu0
      %v1603 = vadd.f32 %v797, %v1602
      %v1604 = vpop.f32.mrb[0].mxu0
      %1605 = vmatprep.mubr.f32.mxu0 0.0
      %1606 = vmatmul.mubr.f32.gmra.mrb[0].mxu0 %v1534
      %v1607 = vpop.f32.mrb[0].mxu0
      %v1608 = vadd.f32 %v798, %v1607
      %v1609 = vpop.f32.mrb[0].mxu0
      %1610 = vdwg.mxu0
      %v1611 = vmax.f32 %v1603, 0.0
      %v1612 = vmax.f32 %v1608, 0.0
      %v1614 = vsel %vm415, %v221, 0
      %1616 = vmatprep.subr.mxu0 0.0
      %1617 = vmatpush1.msra.mxu0 %v1611
      %1618 = vmatprep.subr.mxu0 0.0
      %1619 = vmatpush1.msra.mxu0 %v1612
      %1620 = vmatprep.subr.mxu0 0.0
      %1621 = vmatpush1.msra.mxu0 0.0
      %1622 = vmatprep.subr.mxu0 0.0
      %1623 = vmatpush1.msra.mxu0 0.0
      %1624 = vmatprep.subr.mxu0 0.0
      %1625 = vmatpush1.msra.mxu0 0.0
      %1626 = vmatprep.subr.mxu0 0.0
      %1627 = vmatpush1.msra.mxu0 0.0
      %1628 = vmatprep.subr.mxu0 0.0
      %1629 = vmatpush1.msra.mxu0 0.0
      %1630 = vmatprep.subr.mxu0 0.0
      %1631 = vmatpush1.msra.mxu0 0.0
      %1632 = vmatprep.subr.mxu0 0.0
      %1633 = vmatpush1.msra.mxu0 0.0
      %1634 = vmatprep.subr.mxu0 0.0
      %1635 = vmatpush1.msra.mxu0 0.0
      %1636 = vmatprep.subr.mxu0 0.0
      %1637 = vmatpush1.msra.mxu0 0.0
      %1638 = vmatprep.subr.mxu0 0.0
      %1639 = vmatpush1.msra.mxu0 0.0
      %1640 = vmatprep.subr.mxu0 0.0
      %1641 = vmatpush1.msra.mxu0 0.0
      %1642 = vmatprep.subr.mxu0 0.0
      %1643 = vmatpush1.msra.mxu0 0.0
      %1644 = vmatprep.subr.mxu0 0.0
      %1645 = vmatpush1.msra.mxu0 0.0
      %1646 = vmatprep.subr.mxu0 0.0
      %1647 = vmatpush1.msra.mxu0 0.0
      %1648 = vmatprep.subr.mxu0 0.0
      %1649 = vmatpush1.msra.mxu0 0.0
      %1650 = vmatprep.subr.mxu0 0.0
      %1651 = vmatpush1.msra.mxu0 0.0
      %1652 = vmatprep.subr.mxu0 0.0
      %1653 = vmatpush1.msra.mxu0 0.0
      %1654 = vmatprep.subr.mxu0 0.0
      %1655 = vmatpush1.msra.mxu0 0.0
      %1656 = vmatprep.subr.mxu0 0.0
      %1657 = vmatpush1.msra.mxu0 0.0
      %1658 = vmatprep.subr.mxu0 0.0
      %1659 = vmatpush1.msra.mxu0 0.0
      %1660 = vmatprep.subr.mxu0 0.0
      %1661 = vmatpush1.msra.mxu0 0.0
      %1662 = vmatprep.subr.mxu0 0.0
      %1663 = vmatpush1.msra.mxu0 0.0
      %1664 = vmatprep.subr.mxu0 0.0
      %1665 = vmatpush1.msra.mxu0 0.0
      %1666 = vmatprep.subr.mxu0 0.0
      %1667 = vmatpush1.msra.mxu0 0.0
      %1668 = vmatprep.subr.mxu0 0.0
      %1669 = vmatpush1.msra.mxu0 0.0
      %1670 = vmatprep.subr.mxu0 0.0
      %1671 = vmatpush1.msra.mxu0 0.0
      %1672 = vmatprep.subr.mxu0 0.0
      %1673 = vmatpush1.msra.mxu0 0.0
      %1674 = vmatprep.subr.mxu0 0.0
      %1675 = vmatpush1.msra.mxu0 0.0
      %1676 = vmatprep.subr.mxu0 0.0
      %1677 = vmatpush1.msra.mxu0 0.0
      %1678 = vmatprep.subr.mxu0 0.0
      %1679 = vmatpush1.msra.mxu0 0.0
      %1680 = vmatprep.mubr.f32.mxu0 0.0
      %1681 = vmatmul.mubr.f32.gmra.mrb[0].mxu0 %v1614
      %v1682 = vpop.f32.mrb[0].mxu0
      %v1683 = vadd.f32 %v227, %v1682
      %v1684 = vpop.f32.mrb[0].mxu0
      %1685 = vdwg.mxu0
      %v1687 = vsel %vm415, %v222, 0
      %1689 = vmatprep.subr.mxu0 0.0
      %1690 = vmatpush1.msra.mxu0 %v1611
      %1691 = vmatprep.subr.mxu0 0.0
      %1692 = vmatpush1.msra.mxu0 %v1612
      %1693 = vmatprep.subr.mxu0 0.0
      %1694 = vmatpush1.msra.mxu0 0.0
      %1695 = vmatprep.subr.mxu0 0.0
      %1696 = vmatpush1.msra.mxu0 0.0
      %1697 = vmatprep.subr.mxu0 0.0
      %1698 = vmatpush1.msra.mxu0 0.0
      %1699 = vmatprep.subr.mxu0 0.0
      %1700 = vmatpush1.msra.mxu0 0.0
      %1701 = vmatprep.subr.mxu0 0.0
      %1702 = vmatpush1.msra.mxu0 0.0
      %1703 = vmatprep.subr.mxu0 0.0
      %1704 = vmatpush1.msra.mxu0 0.0
      %1705 = vmatprep.subr.mxu0 0.0
      %1706 = vmatpush1.msra.mxu0 0.0
      %1707 = vmatprep.subr.mxu0 0.0
      %1708 = vmatpush1.msra.mxu0 0.0
      %1709 = vmatprep.subr.mxu0 0.0
      %1710 = vmatpush1.msra.mxu0 0.0
      %1711 = vmatprep.subr.mxu0 0.0
      %1712 = vmatpush1.msra.mxu0 0.0
      %1713 = vmatprep.subr.mxu0 0.0
      %1714 = vmatpush1.msra.mxu0 0.0
      %1715 = vmatprep.subr.mxu0 0.0
      %1716 = vmatpush1.msra.mxu0 0.0
      %1717 = vmatprep.subr.mxu0 0.0
      %1718 = vmatpush1.msra.mxu0 0.0
      %1719 = vmatprep.subr.mxu0 0.0
      %1720 = vmatpush1.msra.mxu0 0.0
      %1721 = vmatprep.subr.mxu0 0.0
      %1722 = vmatpush1.msra.mxu0 0.0
      %1723 = vmatprep.subr.mxu0 0.0
      %1724 = vmatpush1.msra.mxu0 0.0
      %1725 = vmatprep.subr.mxu0 0.0
      %1726 = vmatpush1.msra.mxu0 0.0
      %1727 = vmatprep.subr.mxu0 0.0
      %1728 = vmatpush1.msra.mxu0 0.0
      %1729 = vmatprep.subr.mxu0 0.0
      %1730 = vmatpush1.msra.mxu0 0.0
      %1731 = vmatprep.subr.mxu0 0.0
      %1732 = vmatpush1.msra.mxu0 0.0
      %1733 = vmatprep.subr.mxu0 0.0
      %1734 = vmatpush1.msra.mxu0 0.0
      %1735 = vmatprep.subr.mxu0 0.0
      %1736 = vmatpush1.msra.mxu0 0.0
      %1737 = vmatprep.subr.mxu0 0.0
      %1738 = vmatpush1.msra.mxu0 0.0
      %1739 = vmatprep.subr.mxu0 0.0
      %1740 = vmatpush1.msra.mxu0 0.0
      %1741 = vmatprep.subr.mxu0 0.0
      %1742 = vmatpush1.msra.mxu0 0.0
      %1743 = vmatprep.subr.mxu0 0.0
      %1744 = vmatpush1.msra.mxu0 0.0
      %1745 = vmatprep.subr.mxu0 0.0
      %1746 = vmatpush1.msra.mxu0 0.0
      %1747 = vmatprep.subr.mxu0 0.0
      %1748 = vmatpush1.msra.mxu0 0.0
      %1749 = vmatprep.subr.mxu0 0.0
      %1750 = vmatpush1.msra.mxu0 0.0
      %1751 = vmatprep.subr.mxu0 0.0
      %1752 = vmatpush1.msra.mxu0 0.0
      %1753 = vmatprep.mubr.f32.mxu0 0.0
      %1754 = vmatmul.mubr.f32.gmra.mrb[0].mxu0 %v1687
      %v1755 = vpop.f32.mrb[0].mxu0
      %v1756 = vadd.f32 %v233, %v1755
      %v1757 = vpop.f32.mrb[0].mxu0
      %1758 = vdwg.mxu0
      %v1759 = vmax.f32 %v1756, -9.0
      %v1760 = vmin.f32 %v1759, 4.0
      %v1761 = vmul.f32 %v1760, 1.442695
      %v1762 = vpow.pop %v1761
      %s1763 = smul.u32 %s820, 2
      %s1764 = scalar_lea.vmem %s4, %s1763
      %v1765 = vld [vmem:[%s1764] sm:$0x3]
      %v1766 = vmul.f32 %v1762, %v1765
      %v1767 = vadd.f32 %v1683, %v1766
      %v1768 = vmax.f32 %v1767, -0.2
      %v1769 = vmin.f32 %v1768, 0.4
      %v1770 = vsub.f32 %v1683, %v1769
      %v1771 = vmul.f32 %v1770, %v1770
      %vm1772 = vcmask 123904
      %v1773 = vsel %vm1772, %v1771, 0.0
      %v1774 = vrot.slane %v1773, 4
      %v1775 = vadd.f32 %v1773, %v1774
      %v1776 = vrot.slane %v1775, 2
      %v1777 = vadd.f32 %v1775, %v1776
      %v1778 = vrot.slane %v1777, 1
      %v1779 = vadd.f32 %v1777, %v1778
      %v1780 = vadd.f32 %v833, %v1779
      %v1781 = vadd.f32 %v832, %v1769
      %s1782 = scalar_lea.vmem [#allocation3], %s1763
      %1783 = vst.msk [vmem:[%s1782] sm:$0x3] %vm1772, %v1769
    $region37: #{tpu_custom_call.1} parent=1 // loop_footer
      %s824 = sadd.s32 1, %s820
    $region38: #{tpu_custom_call.1} parent=1 // loop_footer_branch
      %819 = sbr.rel target = $region34
    $region39: #{tpu_custom_call.1} parent=1 // loop_exit
      _
    %vm1784 = vcmask 122880
    %1785 = vst.msk [vmem:[#allocation5] sm:$0x1] %vm1784, %v833
    // Predicated region
    $region40: #{tpu_custom_call.1} parent=1 // pred_check
      _
    $region41: #{tpu_custom_call.1} parent=1 // pred_check_branch
      %1787 = sbr.rel (0) target = $region43
    $region42: #{tpu_custom_call.1} parent=1 // pred_region
      %s1789 = ssub.s32 384, 384
      %1790 = vsyncadd [#allocation4], %s1789
      %s1791 = sshll.u32 [#allocation3], 4
      %s1792 = int_to_ptr.vmem [resolvable:$true] %s1791
      %1797 = dma.vmem_to_hbm [thread:$0]  %s1792, 384, %s6, [#allocation4], 32, 32, 2
    $region43: #{tpu_custom_call.1} parent=1 // pred_fallthru
      _
    // Predicated region
    $region44: #{tpu_custom_call.1} parent=1 // pred_check
      _
    $region45: #{tpu_custom_call.1} parent=1 // pred_check_branch
      %1799 = sbr.rel (0) target = $region47
    $region46: #{tpu_custom_call.1} parent=1 // pred_region
      %s1801 = ssub.s32 16, 16
      %1802 = vsyncadd [#allocation6], %s1801
      %s1804 = sshll.u32 [#allocation5], 4
      %s1805 = int_to_ptr.vmem [resolvable:$true] %s1804
      %1807 = dma.vmem_to_hbm [thread:$0]  %s1805, 16, %s7, [#allocation6]
    $region47: #{tpu_custom_call.1} parent=1 // pred_fallthru
      _
    // Predicated region
    $region48: #{tpu_custom_call.1} parent=1 // pred_check
      _
    $region49: #{tpu_custom_call.1} parent=1 // pred_check_branch
      %1809 = sbr.rel (0) target = $region51
    $region50: #{tpu_custom_call.1} parent=1 // pred_region
      %1810 = dma.done [#allocation4], 384
    $region51: #{tpu_custom_call.1} parent=1 // pred_fallthru
      _
    // Predicated region
    $region52: #{tpu_custom_call.1} parent=1 // pred_check
      _
    $region53: #{tpu_custom_call.1} parent=1 // pred_check_branch
      %1812 = sbr.rel (0) target = $region55
    $region54: #{tpu_custom_call.1} parent=1 // pred_region
      %1813 = dma.done [#allocation6], 16
    $region55: #{tpu_custom_call.1} parent=1 // pred_fallthru
      _
    %1814 = vsyncpa [#allocation4], 1
    %1815 = vsyncpa [#allocation6], 1

</llo_original>
